<compile_context>
chip_gen: v5e
topology: v5e:2x2
jax: 0.10.0
libtpu: 0.0.40
codegen_flags: <defaults>
</compile_context>

<pallas_src>
import math
from functools import partial

import jax
import jax.numpy as jnp
from jax import lax
from jax.experimental import pallas as pl
from jax.experimental.pallas import tpu as pltpu

EPS = 1e-5


# ------------------------- shared math -------------------------
def _ln_last(x, g, b):
    # LayerNorm over the last axis; g/b broadcast over leading axes.
    mu = jnp.mean(x, axis=-1, keepdims=True)
    var = jnp.mean(jnp.square(x - mu), axis=-1, keepdims=True)
    return (x - mu) * lax.rsqrt(var + EPS) * g + b


def _ln_chan(x, g, b):
    # LayerNorm over axis 0 (channel axis of a channels-first (H, N) tile);
    # g/b are (H, 1).
    mu = jnp.mean(x, axis=0, keepdims=True)
    var = jnp.mean(jnp.square(x - mu), axis=0, keepdims=True)
    return (x - mu) * lax.rsqrt(var + EPS) * g + b


def _gelu(x):
    # exact GELU (PyTorch nn.GELU default, erf-based)
    return 0.5 * x * (1.0 + lax.erf(x * (1.0 / math.sqrt(2.0))))


# --------------------------------- fused Pallas kernel ---------------------------------
def fused_transformer_kernel(x_ref, w_dr_ref, g_dr_ref, b_dr_ref,
                             wqkv_ref, g_blk_ref, b_blk_ref, w1_ref, w2_ref,
                             g_f_ref, b_f_ref, wf1_ref, wf2_ref,
                             g_c_ref, b_c_ref, w_cls_ref, b_cls_ref,
                             o_ref, t_scr, p_scr,
                             *, depth, bt, N, H, hid_blk):
    f32 = jnp.float32
    scale = 1.0 / math.sqrt(N)

    # ---- stage 1: dim_reduction (Linear + LayerNorm), lane-dense over F4 ----
    # w_dr / g_dr / b_dr columns were pre-permuted host-side to head-major
    # order (col = h*N + n); LayerNorm stats over the full row are
    # permutation-invariant, and gamma/beta carry the matching permutation.
    h = jnp.dot(x_ref[...], w_dr_ref[...], preferred_element_type=f32)   # (bt, F4)
    h = _ln_last(h, g_dr_ref[...], b_dr_ref[...])

    # ---- stage 2: (bt, F4) -> (bt, H, N) channels-first fold ----
    # Head-major columns mean each head's N=32 tokens are lane-contiguous, so
    # this is H=8 full-width sublane stores (was 32 narrow masked stores).
    for hh in range(H):
        t_scr[:, hh, :] = h[:, hh * N:(hh + 1) * N]
    t_all = t_scr[...]                                                    # (bt, H, N)

    wqkv = wqkv_ref[...]     # (depth, 3H, H)
    g_blk = g_blk_ref[...]   # (depth, H, 1)
    b_blk = b_blk_ref[...]
    w1 = w1_ref[...]         # (depth, hid_blk, H)
    w2 = w2_ref[...]         # (depth, H, hid_blk)

    # ---- stage 3+4: per-batch channels-first transformer blocks + pooling ----
    # NOTE: depth/batch loops are statically unrolled (depth=2, bt=2 is tiny);
    # for much larger depth switch to a grid axis / lax.fori_loop to bound
    # vreg live ranges and let Pallas pipeline per-block weight DMAs.
    for b in range(bt):
        t = t_all[b]                                                      # (H, N)
        for d in range(depth):
            # fused q/k/v projection: weight @ activation, N on lanes
            qkv = jnp.dot(wqkv[d], t, preferred_element_type=f32)        # (3H, N)
            q = qkv[0 * H:1 * H, :]                                       # sublane slices
            k = qkv[1 * H:2 * H, :]
            v = qkv[2 * H:3 * H, :]

            # attention over the channel (H) axis, as in the PyTorch code:
            # score[i,j] = sum_n q[i,n] * k[j,n] / sqrt(N)
            s = jnp.einsum('hn,gn->hg', q, k,
                           preferred_element_type=f32) * scale            # (H, H)
            s = s - jnp.max(s, axis=-1, keepdims=True)
            e = jnp.exp(s)
            p = e / jnp.sum(e, axis=-1, keepdims=True)                    # exact division

            attn = jnp.dot(p, v, preferred_element_type=f32)              # (H, N)

            # residual FeedForward: LayerNorm(H) -> Linear -> GELU -> Linear
            ln = _ln_chan(attn, g_blk[d], b_blk[d])                       # (H, N)
            h1 = _gelu(jnp.dot(w1[d], ln, preferred_element_type=f32))    # (hid, N)
            # second Linear has contraction depth hid_blk (=2): do it on the
            # VPU as broadcast-FMAs instead of an MXU push/pop.
            ff = h1[0:1, :] * w2[d][:, 0:1]
            for m in range(1, hid_blk):
                ff = ff + h1[m:m + 1, :] * w2[d][:, m:m + 1]              # (H, N)
            t = attn + ff

        # AdaptiveAvgPool1d(1) over channels -> one (1, N) token row per batch
        p_scr[b:b + 1, :] = jnp.mean(t, axis=0, keepdims=True)

    # ---- stage 5: final FeedForward (token dim N=32 on lanes) ----
    pooled = p_scr[...]                                                   # (bt, N)
    lnf = _ln_last(pooled, g_f_ref[...], b_f_ref[...])
    hf = _gelu(jnp.dot(lnf, wf1_ref[...], preferred_element_type=f32))
    ffo = jnp.dot(hf, wf2_ref[...], preferred_element_type=f32)

    # ---- stage 6: classifier: LayerNorm + Linear(bias) ----
    lnc = _ln_last(ffo, g_c_ref[...], b_c_ref[...])
    o_ref[...] = (jnp.dot(lnc, w_cls_ref[...], preferred_element_type=f32)
                  + b_cls_ref[...])


# ----------------------------------- wrapper -----------------------------------
def _const_spec(a):
    nd = a.ndim
    return pl.BlockSpec(a.shape, lambda i, _nd=nd: (0,) * _nd)


def transformer_forward(x, kp, *, depth, batch_tile=None):
    B, F = x.shape
    F4 = kp['w_dr'].shape[1]
    H = kp['wqkv'].shape[2]
    N = F4 // H
    hid_blk = kp['w2'].shape[2]
    hid_fin = kp['wf1'].shape[1]

    # Batch tile: a single grid step for toy batches; for larger B the batch
    # grid axis is marked "parallel" so v7x's two TensorCores split it
    # (no-op on single-TC v5e/v6e).  Real batch tiles should be multiples of 8.
    bt = batch_tile if batch_tile is not None else (B if B <= 8 else 8)
    assert B % bt == 0, "batch must be divisible by the batch tile"
    grid = (B // bt,)

    args = (x, kp['w_dr'], kp['g_dr'], kp['b_dr'],
            kp['wqkv'], kp['g_blk'], kp['b_blk'], kp['w1'], kp['w2'],
            kp['g_f'], kp['b_f'], kp['wf1'], kp['wf2'],
            kp['g_c'], kp['b_c'], kp['w_cls'], kp['b_cls'])

    # advisory cost estimate for XLA scheduling around the fused custom call
    flops = int(2 * B * F * F4
                + 2 * depth * B * H * N * (3 * H + 2 * H + 2 * hid_blk)
                + 2 * B * (2 * N * hid_fin + N))
    transcendentals = int(depth * B * (H * H + hid_blk * N) + B * hid_fin)
    bytes_accessed = int(sum(a.size * a.dtype.itemsize for a in args) + B * 4)

    kernel = partial(fused_transformer_kernel,
                     depth=depth, bt=bt, N=N, H=H, hid_blk=hid_blk)

    in_specs = [pl.BlockSpec((bt, F), lambda i: (i, 0))]
    # constant index maps -> weights stay VMEM-resident across grid steps
    in_specs += [_const_spec(a) for a in args[1:]]

    return pl.pallas_call(
        kernel,
        out_shape=jax.ShapeDtypeStruct((B, 1), jnp.float32),
        grid=grid,
        in_specs=in_specs,
        out_specs=pl.BlockSpec((bt, 1), lambda i: (i, 0)),
        scratch_shapes=[pltpu.VMEM((bt, H, N), jnp.float32),   # channels-first act
                        pltpu.VMEM((bt, N), jnp.float32)],     # pooled rows
        compiler_params=pltpu.CompilerParams(
            dimension_semantics=("parallel",),
            # explicit scoped-VMEM budget: tiny kernel, safe on v7x's 64 MiB too
            vmem_limit_bytes=32 * 1024 * 1024),
        cost_estimate=pl.CostEstimate(
            flops=flops, transcendentals=transcendentals,
            bytes_accessed=bytes_accessed),
    )(*args)


# ----------------------- host-side (one-time) weight relayout -----------------------
def prepare_kernel_params(p):
    """Relayout PyTorch-layout params into the channels-first layout the kernel uses."""
    F, F4 = p['w_dr'].shape
    H = p['wqkv'].shape[1]
    N = F4 // H
    return dict(
        # dim_reduction weight / LN params with columns permuted to head-major
        # (col = h*N + n) so the in-kernel fold is 8 full-width sublane stores.
        w_dr=p['w_dr'].reshape(F, N, H).transpose(0, 2, 1).reshape(F, F4),
        g_dr=p['g_dr'].reshape(N, H).T.reshape(1, F4),
        b_dr=p['b_dr'].reshape(N, H).T.reshape(1, F4),
        # block weights in weight@activation (channels-first) orientation
        wqkv=jnp.transpose(p['wqkv'], (0, 2, 1)),    # (depth, 3H, H)
        g_blk=jnp.transpose(p['g_blk'], (0, 2, 1)),  # (depth, H, 1)
        b_blk=jnp.transpose(p['b_blk'], (0, 2, 1)),  # (depth, H, 1)
        w1=jnp.transpose(p['w1'], (0, 2, 1)),        # (depth, hid_blk, H)
        w2=jnp.transpose(p['w2'], (0, 2, 1)),        # (depth, H, hid_blk)
        # tail (token-major, already lane-dense) unchanged
        g_f=p['g_f'], b_f=p['b_f'], wf1=p['wf1'], wf2=p['wf2'],
        g_c=p['g_c'], b_c=p['b_c'], w_cls=p['w_cls'], b_cls=p['b_cls'],
    )


# ------------------------------- pure-JAX reference -------------------------------
def transformer_reference(x, p, *, depth):
    F4 = p['w_dr'].shape[1]
    H = p['wqkv'].shape[1]
    N = F4 // H
    h = jnp.dot(x, p['w_dr'])
    h = _ln_last(h, p['g_dr'], p['b_dr'])
    t = h.reshape(x.shape[0], N, H)
    scale = 1.0 / math.sqrt(N)
    for d in range(depth):
        qkv = jnp.einsum('bnh,hj->bnj', t, p['wqkv'][d])
        q, k, v = qkv[..., :H], qkv[..., H:2 * H], qkv[..., 2 * H:]
        score = jnp.einsum('bni,bnj->bij', q, k) * scale
        m = jnp.max(score, axis=-1, keepdims=True)
        e = jnp.exp(score - m)
        score = e / jnp.sum(e, axis=-1, keepdims=True)
        attn = jnp.einsum('bij,bnj->bni', score, v)
        ln = _ln_last(attn, p['g_blk'][d], p['b_blk'][d])
        h1 = _gelu(jnp.einsum('bnh,hm->bnm', ln, p['w1'][d]))
        ff = jnp.einsum('bnm,mh->bnh', h1, p['w2'][d])
        t = attn + ff
    pooled = jnp.mean(t, axis=-1)
    lnf = _ln_last(pooled, p['g_f'], p['b_f'])
    hf = _gelu(jnp.dot(lnf, p['wf1']))
    ffo = jnp.dot(hf, p['wf2'])
    lnc = _ln_last(ffo, p['g_c'], p['b_c'])
    return jnp.dot(lnc, p['w_cls']) + p['b_cls']


# ------------------------------- parameter init -------------------------------
def init_params(key, F, dim_red, H, depth):
    F4 = F * dim_red
    N = F4 // H
    hid_blk = max(H // 4, 1)   # block FeedForward hidden = in_channels // 4
    hid_fin = N // 4           # final FeedForward hidden = in_channels // 4
    std = 0.02
    ks = jax.random.split(key, 7)

    def tn(k, shape):
        # trunc_normal_(std=0.02)-style init
        return std * jax.random.truncated_normal(k, -2.0, 2.0, shape, jnp.float32)

    return dict(
        w_dr=tn(ks[0], (F, F4)),
        g_dr=jnp.ones((1, F4), jnp.float32), b_dr=jnp.zeros((1, F4), jnp.float32),
        wqkv=tn(ks[1], (depth, H, 3 * H)),          # fused q|k|v projection
        g_blk=jnp.ones((depth, 1, H), jnp.float32),
        b_blk=jnp.zeros((depth, 1, H), jnp.float32),
        w1=tn(ks[2], (depth, H, hid_blk)),
        w2=tn(ks[3], (depth, hid_blk, H)),
        g_f=jnp.ones((1, N), jnp.float32), b_f=jnp.zeros((1, N), jnp.float32),
        wf1=tn(ks[4], (N, hid_fin)),
        wf2=tn(ks[5], (hid_fin, N)),
        g_c=jnp.ones((1, N), jnp.float32), b_c=jnp.zeros((1, N), jnp.float32),
        w_cls=tn(ks[6], (N, 1)),
        b_cls=jnp.zeros((1, 1), jnp.float32),
    )


# ------------------------------------- main -------------------------------------
if __name__ == "__main__":
    # small shapes consistent with the module:
    # feature_dimensions=64, dim_reduction=4, num_head=8, depth=2 -> N = 32 tokens
    B, F, DIM_RED, H, DEPTH = 2, 64, 4, 8, 2

    key = jax.random.PRNGKey(0)
    kx, kparam = jax.random.split(key)
    x = jax.random.normal(kx, (B, F), jnp.float32)
    params = init_params(kparam, F, DIM_RED, H, DEPTH)
    kparams = prepare_kernel_params(params)   # one-time host-side weight relayout

    fwd = jax.jit(partial(transformer_forward, depth=DEPTH))
    out = jax.block_until_ready(fwd(x, kparams))

    ref = transformer_reference(x, params, depth=DEPTH)
    assert out.shape == (B, 1), out.shape
    assert bool(jnp.all(jnp.isfinite(out)))
    # exact softmax division in-kernel; remaining slack only covers MXU
    # default-precision f32 matmul / op-ordering differences vs. the reference.
    assert bool(jnp.allclose(out, ref, rtol=1e-3, atol=1e-3)), (out, ref)

    print("KERNEL_OK")
</pallas_src>

<mosaic_0001>
module attributes {stable_mosaic.version = 11 : i64} {
  func.func @fused_transformer_kernel(%arg0: i32, %arg1: memref<2x64xf32, #tpu.memory_space<vmem>>, %arg2: memref<64x256xf32, #tpu.memory_space<vmem>>, %arg3: memref<1x256xf32, #tpu.memory_space<vmem>>, %arg4: memref<1x256xf32, #tpu.memory_space<vmem>>, %arg5: memref<2x24x8xf32, #tpu.memory_space<vmem>>, %arg6: memref<2x8x1xf32, #tpu.memory_space<vmem>>, %arg7: memref<2x8x1xf32, #tpu.memory_space<vmem>>, %arg8: memref<2x2x8xf32, #tpu.memory_space<vmem>>, %arg9: memref<2x8x2xf32, #tpu.memory_space<vmem>>, %arg10: memref<1x32xf32, #tpu.memory_space<vmem>>, %arg11: memref<1x32xf32, #tpu.memory_space<vmem>>, %arg12: memref<32x8xf32, #tpu.memory_space<vmem>>, %arg13: memref<8x32xf32, #tpu.memory_space<vmem>>, %arg14: memref<1x32xf32, #tpu.memory_space<vmem>>, %arg15: memref<1x32xf32, #tpu.memory_space<vmem>>, %arg16: memref<32x1xf32, #tpu.memory_space<vmem>>, %arg17: memref<1x1xf32, #tpu.memory_space<vmem>>, %arg18: memref<2x1xf32, #tpu.memory_space<vmem>>, %arg19: memref<2x8x32xf32, #tpu.memory_space<vmem>>, %arg20: memref<2x32xf32, #tpu.memory_space<vmem>>) attributes {dimension_semantics = [#tpu.dimension_semantics<parallel>], iteration_bounds = array<i64: 1>, scalar_prefetch = 0 : i64, scratch_operands = 2 : i64, tpu.core_type = #tpu.core_type<tc>, window_params = [{transform_indices = @transform_0, window_bounds = array<i64: 2, 64>}, {pipeline_mode = #tpu.pipeline_mode<synchronous>, transform_indices = @transform_1, window_bounds = array<i64: 64, 256>}, {pipeline_mode = #tpu.pipeline_mode<synchronous>, transform_indices = @transform_2, window_bounds = array<i64: 1, 256>}, {pipeline_mode = #tpu.pipeline_mode<synchronous>, transform_indices = @transform_3, window_bounds = array<i64: 1, 256>}, {pipeline_mode = #tpu.pipeline_mode<synchronous>, transform_indices = @transform_4, window_bounds = array<i64: 2, 24, 8>}, {pipeline_mode = #tpu.pipeline_mode<synchronous>, transform_indices = @transform_5, window_bounds = array<i64: 2, 8, 1>}, {pipeline_mode = #tpu.pipeline_mode<synchronous>, transform_indices = @transform_6, window_bounds = array<i64: 2, 8, 1>}, {pipeline_mode = #tpu.pipeline_mode<synchronous>, transform_indices = @transform_7, window_bounds = array<i64: 2, 2, 8>}, {pipeline_mode = #tpu.pipeline_mode<synchronous>, transform_indices = @transform_8, window_bounds = array<i64: 2, 8, 2>}, {pipeline_mode = #tpu.pipeline_mode<synchronous>, transform_indices = @transform_9, window_bounds = array<i64: 1, 32>}, {pipeline_mode = #tpu.pipeline_mode<synchronous>, transform_indices = @transform_10, window_bounds = array<i64: 1, 32>}, {pipeline_mode = #tpu.pipeline_mode<synchronous>, transform_indices = @transform_11, window_bounds = array<i64: 32, 8>}, {pipeline_mode = #tpu.pipeline_mode<synchronous>, transform_indices = @transform_12, window_bounds = array<i64: 8, 32>}, {pipeline_mode = #tpu.pipeline_mode<synchronous>, transform_indices = @transform_13, window_bounds = array<i64: 1, 32>}, {pipeline_mode = #tpu.pipeline_mode<synchronous>, transform_indices = @transform_14, window_bounds = array<i64: 1, 32>}, {pipeline_mode = #tpu.pipeline_mode<synchronous>, transform_indices = @transform_15, window_bounds = array<i64: 32, 1>}, {pipeline_mode = #tpu.pipeline_mode<synchronous>, transform_indices = @transform_16, window_bounds = array<i64: 1, 1>}, {transform_indices = @transform_17, window_bounds = array<i64: 2, 1>}]} {
    %c0 = arith.constant 0 : index
    %c0_0 = arith.constant 0 : index
    %0 = vector.load %arg1[%c0, %c0_0] : memref<2x64xf32, #tpu.memory_space<vmem>>, vector<2x64xf32>
    %c0_1 = arith.constant 0 : index
    %c0_2 = arith.constant 0 : index
    %1 = vector.load %arg2[%c0_1, %c0_2] : memref<64x256xf32, #tpu.memory_space<vmem>>, vector<64x256xf32>
    %cst = arith.constant dense<0.000000e+00> : vector<2x256xf32>
    %2 = tpu.matmul %0, %1, %cst {dimension_numbers = #tpu.dot_dimension_numbers<[1], [0], [0], [1], [0, 0, 1, 1], [], []>} : vector<2x64xf32>, vector<64x256xf32>, vector<2x256xf32> -> vector<2x256xf32>
    %c0_3 = arith.constant 0 : index
    %c0_4 = arith.constant 0 : index
    %3 = vector.load %arg3[%c0_3, %c0_4] : memref<1x256xf32, #tpu.memory_space<vmem>>, vector<1x256xf32>
    %c0_5 = arith.constant 0 : index
    %c0_6 = arith.constant 0 : index
    %4 = vector.load %arg4[%c0_5, %c0_6] : memref<1x256xf32, #tpu.memory_space<vmem>>, vector<1x256xf32>
    %cst_7 = arith.constant dense<0.000000e+00> : vector<2xf32>
    %5 = vector.multi_reduction <add>, %2, %cst_7 [1] : vector<2x256xf32> to vector<2xf32>
    %6 = vector.shape_cast %5 : vector<2xf32> to vector<2x1xf32>
    %cst_8 = arith.constant 2.560000e+02 : f32
    %7 = vector.broadcast %cst_8 : f32 to vector<2x1xf32>
    %8 = arith.divf %6, %7 : vector<2x1xf32>
    %9 = vector.broadcast %8 : vector<2x1xf32> to vector<2x256xf32>
    %10 = arith.subf %2, %9 : vector<2x256xf32>
    %11 = arith.mulf %10, %10 : vector<2x256xf32>
    %cst_9 = arith.constant dense<0.000000e+00> : vector<2xf32>
    %12 = vector.multi_reduction <add>, %11, %cst_9 [1] : vector<2x256xf32> to vector<2xf32>
    %13 = vector.shape_cast %12 : vector<2xf32> to vector<2x1xf32>
    %cst_10 = arith.constant 2.560000e+02 : f32
    %14 = vector.broadcast %cst_10 : f32 to vector<2x1xf32>
    %15 = arith.divf %13, %14 : vector<2x1xf32>
    %16 = vector.broadcast %8 : vector<2x1xf32> to vector<2x256xf32>
    %17 = arith.subf %2, %16 : vector<2x256xf32>
    %cst_11 = arith.constant 9.99999974E-6 : f32
    %18 = vector.broadcast %cst_11 : f32 to vector<2x1xf32>
    %19 = arith.addf %15, %18 : vector<2x1xf32>
    %20 = math.rsqrt %19 : vector<2x1xf32>
    %21 = vector.broadcast %20 : vector<2x1xf32> to vector<2x256xf32>
    %22 = arith.mulf %17, %21 : vector<2x256xf32>
    %23 = vector.broadcast %3 : vector<1x256xf32> to vector<2x256xf32>
    %24 = arith.mulf %22, %23 : vector<2x256xf32>
    %25 = vector.broadcast %4 : vector<1x256xf32> to vector<2x256xf32>
    %26 = arith.addf %24, %25 : vector<2x256xf32>
    %27 = vector.extract_strided_slice %26 {offsets = [0, 0], sizes = [2, 32], strides = [1, 1]} : vector<2x256xf32> to vector<2x32xf32>
    %c0_12 = arith.constant 0 : index
    %c0_13 = arith.constant 0 : index
    %c0_14 = arith.constant 0 : index
    %28 = vector.load %arg19[%c0_12, %c0_13, %c0_14] : memref<2x8x32xf32, #tpu.memory_space<vmem>>, vector<2x1x32xf32>
    %29 = vector.shape_cast %28 : vector<2x1x32xf32> to vector<2x32xf32>
    %30 = vector.shape_cast %27 : vector<2x32xf32> to vector<2x1x32xf32>
    tpu.vector_store %arg19[%c0_12, %c0_13, %c0_14], %30 {strides = array<i32>} : memref<2x8x32xf32, #tpu.memory_space<vmem>>, vector<2x1x32xf32>,
    %31 = vector.extract_strided_slice %26 {offsets = [0, 32], sizes = [2, 32], strides = [1, 1]} : vector<2x256xf32> to vector<2x32xf32>
    %c0_15 = arith.constant 0 : index
    %c1 = arith.constant 1 : index
    %c0_16 = arith.constant 0 : index
    %32 = vector.load %arg19[%c0_15, %c1, %c0_16] : memref<2x8x32xf32, #tpu.memory_space<vmem>>, vector<2x1x32xf32>
    %33 = vector.shape_cast %32 : vector<2x1x32xf32> to vector<2x32xf32>
    %34 = vector.shape_cast %31 : vector<2x32xf32> to vector<2x1x32xf32>
    tpu.vector_store %arg19[%c0_15, %c1, %c0_16], %34 {strides = array<i32>} : memref<2x8x32xf32, #tpu.memory_space<vmem>>, vector<2x1x32xf32>,
    %35 = vector.extract_strided_slice %26 {offsets = [0, 64], sizes = [2, 32], strides = [1, 1]} : vector<2x256xf32> to vector<2x32xf32>
    %c0_17 = arith.constant 0 : index
    %c2 = arith.constant 2 : index
    %c0_18 = arith.constant 0 : index
    %36 = vector.load %arg19[%c0_17, %c2, %c0_18] : memref<2x8x32xf32, #tpu.memory_space<vmem>>, vector<2x1x32xf32>
    %37 = vector.shape_cast %36 : vector<2x1x32xf32> to vector<2x32xf32>
    %38 = vector.shape_cast %35 : vector<2x32xf32> to vector<2x1x32xf32>
    tpu.vector_store %arg19[%c0_17, %c2, %c0_18], %38 {strides = array<i32>} : memref<2x8x32xf32, #tpu.memory_space<vmem>>, vector<2x1x32xf32>,
    %39 = vector.extract_strided_slice %26 {offsets = [0, 96], sizes = [2, 32], strides = [1, 1]} : vector<2x256xf32> to vector<2x32xf32>
    %c0_19 = arith.constant 0 : index
    %c3 = arith.constant 3 : index
    %c0_20 = arith.constant 0 : index
    %40 = vector.load %arg19[%c0_19, %c3, %c0_20] : memref<2x8x32xf32, #tpu.memory_space<vmem>>, vector<2x1x32xf32>
    %41 = vector.shape_cast %40 : vector<2x1x32xf32> to vector<2x32xf32>
    %42 = vector.shape_cast %39 : vector<2x32xf32> to vector<2x1x32xf32>
    tpu.vector_store %arg19[%c0_19, %c3, %c0_20], %42 {strides = array<i32>} : memref<2x8x32xf32, #tpu.memory_space<vmem>>, vector<2x1x32xf32>,
    %43 = vector.extract_strided_slice %26 {offsets = [0, 128], sizes = [2, 32], strides = [1, 1]} : vector<2x256xf32> to vector<2x32xf32>
    %c0_21 = arith.constant 0 : index
    %c4 = arith.constant 4 : index
    %c0_22 = arith.constant 0 : index
    %44 = vector.load %arg19[%c0_21, %c4, %c0_22] : memref<2x8x32xf32, #tpu.memory_space<vmem>>, vector<2x1x32xf32>
    %45 = vector.shape_cast %44 : vector<2x1x32xf32> to vector<2x32xf32>
    %46 = vector.shape_cast %43 : vector<2x32xf32> to vector<2x1x32xf32>
    tpu.vector_store %arg19[%c0_21, %c4, %c0_22], %46 {strides = array<i32>} : memref<2x8x32xf32, #tpu.memory_space<vmem>>, vector<2x1x32xf32>,
    %47 = vector.extract_strided_slice %26 {offsets = [0, 160], sizes = [2, 32], strides = [1, 1]} : vector<2x256xf32> to vector<2x32xf32>
    %c0_23 = arith.constant 0 : index
    %c5 = arith.constant 5 : index
    %c0_24 = arith.constant 0 : index
    %48 = vector.load %arg19[%c0_23, %c5, %c0_24] : memref<2x8x32xf32, #tpu.memory_space<vmem>>, vector<2x1x32xf32>
    %49 = vector.shape_cast %48 : vector<2x1x32xf32> to vector<2x32xf32>
    %50 = vector.shape_cast %47 : vector<2x32xf32> to vector<2x1x32xf32>
    tpu.vector_store %arg19[%c0_23, %c5, %c0_24], %50 {strides = array<i32>} : memref<2x8x32xf32, #tpu.memory_space<vmem>>, vector<2x1x32xf32>,
    %51 = vector.extract_strided_slice %26 {offsets = [0, 192], sizes = [2, 32], strides = [1, 1]} : vector<2x256xf32> to vector<2x32xf32>
    %c0_25 = arith.constant 0 : index
    %c6 = arith.constant 6 : index
    %c0_26 = arith.constant 0 : index
    %52 = vector.load %arg19[%c0_25, %c6, %c0_26] : memref<2x8x32xf32, #tpu.memory_space<vmem>>, vector<2x1x32xf32>
    %53 = vector.shape_cast %52 : vector<2x1x32xf32> to vector<2x32xf32>
    %54 = vector.shape_cast %51 : vector<2x32xf32> to vector<2x1x32xf32>
    tpu.vector_store %arg19[%c0_25, %c6, %c0_26], %54 {strides = array<i32>} : memref<2x8x32xf32, #tpu.memory_space<vmem>>, vector<2x1x32xf32>,
    %55 = vector.extract_strided_slice %26 {offsets = [0, 224], sizes = [2, 32], strides = [1, 1]} : vector<2x256xf32> to vector<2x32xf32>
    %c0_27 = arith.constant 0 : index
    %c7 = arith.constant 7 : index
    %c0_28 = arith.constant 0 : index
    %56 = vector.load %arg19[%c0_27, %c7, %c0_28] : memref<2x8x32xf32, #tpu.memory_space<vmem>>, vector<2x1x32xf32>
    %57 = vector.shape_cast %56 : vector<2x1x32xf32> to vector<2x32xf32>
    %58 = vector.shape_cast %55 : vector<2x32xf32> to vector<2x1x32xf32>
    tpu.vector_store %arg19[%c0_27, %c7, %c0_28], %58 {strides = array<i32>} : memref<2x8x32xf32, #tpu.memory_space<vmem>>, vector<2x1x32xf32>,
    %c0_29 = arith.constant 0 : index
    %c0_30 = arith.constant 0 : index
    %c0_31 = arith.constant 0 : index
    %59 = vector.load %arg19[%c0_29, %c0_30, %c0_31] : memref<2x8x32xf32, #tpu.memory_space<vmem>>, vector<2x8x32xf32>
    %c0_32 = arith.constant 0 : index
    %c0_33 = arith.constant 0 : index
    %c0_34 = arith.constant 0 : index
    %60 = vector.load %arg5[%c0_32, %c0_33, %c0_34] : memref<2x24x8xf32, #tpu.memory_space<vmem>>, vector<2x24x8xf32>
    %c0_35 = arith.constant 0 : index
    %c0_36 = arith.constant 0 : index
    %c0_37 = arith.constant 0 : index
    %61 = vector.load %arg6[%c0_35, %c0_36, %c0_37] : memref<2x8x1xf32, #tpu.memory_space<vmem>>, vector<2x8x1xf32>
    %c0_38 = arith.constant 0 : index
    %c0_39 = arith.constant 0 : index
    %c0_40 = arith.constant 0 : index
    %62 = vector.load %arg7[%c0_38, %c0_39, %c0_40] : memref<2x8x1xf32, #tpu.memory_space<vmem>>, vector<2x8x1xf32>
    %c0_41 = arith.constant 0 : index
    %c0_42 = arith.constant 0 : index
    %c0_43 = arith.constant 0 : index
    %63 = vector.load %arg8[%c0_41, %c0_42, %c0_43] : memref<2x2x8xf32, #tpu.memory_space<vmem>>, vector<2x2x8xf32>
    %c0_44 = arith.constant 0 : index
    %c0_45 = arith.constant 0 : index
    %c0_46 = arith.constant 0 : index
    %64 = vector.load %arg9[%c0_44, %c0_45, %c0_46] : memref<2x8x2xf32, #tpu.memory_space<vmem>>, vector<2x8x2xf32>
    %65 = vector.extract_strided_slice %59 {offsets = [0, 0, 0], sizes = [1, 8, 32], strides = [1, 1, 1]} : vector<2x8x32xf32> to vector<1x8x32xf32>
    %66 = vector.shape_cast %65 : vector<1x8x32xf32> to vector<8x32xf32>
    %67 = vector.extract_strided_slice %60 {offsets = [0, 0, 0], sizes = [1, 24, 8], strides = [1, 1, 1]} : vector<2x24x8xf32> to vector<1x24x8xf32>
    %68 = vector.shape_cast %67 : vector<1x24x8xf32> to vector<24x8xf32>
    %cst_47 = arith.constant dense<0.000000e+00> : vector<24x32xf32>
    %69 = tpu.matmul %68, %66, %cst_47 {dimension_numbers = #tpu.dot_dimension_numbers<[1], [0], [0], [1], [0, 0, 1, 1], [], []>} : vector<24x8xf32>, vector<8x32xf32>, vector<24x32xf32> -> vector<24x32xf32>
    %70 = vector.extract_strided_slice %69 {offsets = [0, 0], sizes = [8, 32], strides = [1, 1]} : vector<24x32xf32> to vector<8x32xf32>
    %71 = vector.extract_strided_slice %69 {offsets = [8, 0], sizes = [8, 32], strides = [1, 1]} : vector<24x32xf32> to vector<8x32xf32>
    %72 = vector.extract_strided_slice %69 {offsets = [16, 0], sizes = [8, 32], strides = [1, 1]} : vector<24x32xf32> to vector<8x32xf32>
    "tpu.trace_start"() <{level = 10 : i32, message = "hn,gn->hg"}> : () -> ()
    %cst_48 = arith.constant dense<0.000000e+00> : vector<8x8xf32>
    %73 = tpu.matmul %70, %71, %cst_48 {dimension_numbers = #tpu.dot_dimension_numbers<[1], [1], [0], [0], [0, 0, 1, 0], [], []>} : vector<8x32xf32>, vector<8x32xf32>, vector<8x8xf32> -> vector<8x8xf32>
    "tpu.trace_stop"() : () -> ()
    %cst_49 = arith.constant 0.176776692 : f32
    %74 = vector.broadcast %cst_49 : f32 to vector<8x8xf32>
    %75 = arith.mulf %73, %74 : vector<8x8xf32>
    %cst_50 = arith.constant dense<0xFF800000> : vector<8xf32>
    %76 = vector.multi_reduction <maximumf>, %75, %cst_50 [1] : vector<8x8xf32> to vector<8xf32>
    %77 = vector.shape_cast %76 : vector<8xf32> to vector<8x1xf32>
    %78 = vector.broadcast %77 : vector<8x1xf32> to vector<8x8xf32>
    %79 = arith.subf %75, %78 : vector<8x8xf32>
    %80 = math.exp %79 : vector<8x8xf32>
    %cst_51 = arith.constant dense<0.000000e+00> : vector<8xf32>
    %81 = vector.multi_reduction <add>, %80, %cst_51 [1] : vector<8x8xf32> to vector<8xf32>
    %82 = vector.shape_cast %81 : vector<8xf32> to vector<8x1xf32>
    %83 = vector.broadcast %82 : vector<8x1xf32> to vector<8x8xf32>
    %84 = arith.divf %80, %83 : vector<8x8xf32>
    %cst_52 = arith.constant dense<0.000000e+00> : vector<8x32xf32>
    %85 = tpu.matmul %84, %72, %cst_52 {dimension_numbers = #tpu.dot_dimension_numbers<[1], [0], [0], [1], [0, 0, 1, 1], [], []>} : vector<8x8xf32>, vector<8x32xf32>, vector<8x32xf32> -> vector<8x32xf32>
    %86 = vector.extract_strided_slice %61 {offsets = [0, 0, 0], sizes = [1, 8, 1], strides = [1, 1, 1]} : vector<2x8x1xf32> to vector<1x8x1xf32>
    %87 = vector.shape_cast %86 : vector<1x8x1xf32> to vector<8x1xf32>
    %88 = vector.extract_strided_slice %62 {offsets = [0, 0, 0], sizes = [1, 8, 1], strides = [1, 1, 1]} : vector<2x8x1xf32> to vector<1x8x1xf32>
    %89 = vector.shape_cast %88 : vector<1x8x1xf32> to vector<8x1xf32>
    %cst_53 = arith.constant dense<0.000000e+00> : vector<32xf32>
    %90 = vector.multi_reduction <add>, %85, %cst_53 [0] : vector<8x32xf32> to vector<32xf32>
    %91 = vector.shape_cast %90 : vector<32xf32> to vector<1x32xf32>
    %cst_54 = arith.constant 8.000000e+00 : f32
    %92 = vector.broadcast %cst_54 : f32 to vector<1x32xf32>
    %93 = arith.divf %91, %92 : vector<1x32xf32>
    %94 = vector.broadcast %93 : vector<1x32xf32> to vector<8x32xf32>
    %95 = arith.subf %85, %94 : vector<8x32xf32>
    %96 = arith.mulf %95, %95 : vector<8x32xf32>
    %cst_55 = arith.constant dense<0.000000e+00> : vector<32xf32>
    %97 = vector.multi_reduction <add>, %96, %cst_55 [0] : vector<8x32xf32> to vector<32xf32>
    %98 = vector.shape_cast %97 : vector<32xf32> to vector<1x32xf32>
    %cst_56 = arith.constant 8.000000e+00 : f32
    %99 = vector.broadcast %cst_56 : f32 to vector<1x32xf32>
    %100 = arith.divf %98, %99 : vector<1x32xf32>
    %101 = vector.broadcast %93 : vector<1x32xf32> to vector<8x32xf32>
    %102 = arith.subf %85, %101 : vector<8x32xf32>
    %cst_57 = arith.constant 9.99999974E-6 : f32
    %103 = vector.broadcast %cst_57 : f32 to vector<1x32xf32>
    %104 = arith.addf %100, %103 : vector<1x32xf32>
    %105 = math.rsqrt %104 : vector<1x32xf32>
    %106 = vector.broadcast %105 : vector<1x32xf32> to vector<8x32xf32>
    %107 = arith.mulf %102, %106 : vector<8x32xf32>
    %108 = vector.broadcast %87 : vector<8x1xf32> to vector<8x32xf32>
    %109 = arith.mulf %107, %108 : vector<8x32xf32>
    %110 = vector.broadcast %89 : vector<8x1xf32> to vector<8x32xf32>
    %111 = arith.addf %109, %110 : vector<8x32xf32>
    %112 = vector.extract_strided_slice %63 {offsets = [0, 0, 0], sizes = [1, 2, 8], strides = [1, 1, 1]} : vector<2x2x8xf32> to vector<1x2x8xf32>
    %113 = vector.shape_cast %112 : vector<1x2x8xf32> to vector<2x8xf32>
    %cst_58 = arith.constant dense<0.000000e+00> : vector<2x32xf32>
    %114 = tpu.matmul %113, %111, %cst_58 {dimension_numbers = #tpu.dot_dimension_numbers<[1], [0], [0], [1], [0, 0, 1, 1], [], []>} : vector<2x8xf32>, vector<8x32xf32>, vector<2x32xf32> -> vector<2x32xf32>
    %cst_59 = arith.constant 5.000000e-01 : f32
    %115 = vector.broadcast %cst_59 : f32 to vector<2x32xf32>
    %116 = arith.mulf %115, %114 : vector<2x32xf32>
    %cst_60 = arith.constant 0.707106769 : f32
    %117 = vector.broadcast %cst_60 : f32 to vector<2x32xf32>
    %118 = arith.mulf %114, %117 : vector<2x32xf32>
    %119 = math.erf %118 : vector<2x32xf32>
    %cst_61 = arith.constant 1.000000e+00 : f32
    %120 = vector.broadcast %cst_61 : f32 to vector<2x32xf32>
    %121 = arith.addf %120, %119 : vector<2x32xf32>
    %122 = arith.mulf %116, %121 : vector<2x32xf32>
    %123 = vector.extract_strided_slice %122 {offsets = [0, 0], sizes = [1, 32], strides = [1, 1]} : vector<2x32xf32> to vector<1x32xf32>
    %124 = vector.extract_strided_slice %64 {offsets = [0, 0, 0], sizes = [1, 8, 2], strides = [1, 1, 1]} : vector<2x8x2xf32> to vector<1x8x2xf32>
    %125 = vector.shape_cast %124 : vector<1x8x2xf32> to vector<8x2xf32>
    %126 = vector.extract_strided_slice %125 {offsets = [0, 0], sizes = [8, 1], strides = [1, 1]} : vector<8x2xf32> to vector<8x1xf32>
    %127 = vector.broadcast %123 : vector<1x32xf32> to vector<8x32xf32>
    %128 = vector.broadcast %126 : vector<8x1xf32> to vector<8x32xf32>
    %129 = arith.mulf %127, %128 : vector<8x32xf32>
    %130 = vector.extract_strided_slice %122 {offsets = [1, 0], sizes = [1, 32], strides = [1, 1]} : vector<2x32xf32> to vector<1x32xf32>
    %131 = vector.extract_strided_slice %64 {offsets = [0, 0, 0], sizes = [1, 8, 2], strides = [1, 1, 1]} : vector<2x8x2xf32> to vector<1x8x2xf32>
    %132 = vector.shape_cast %131 : vector<1x8x2xf32> to vector<8x2xf32>
    %133 = vector.extract_strided_slice %132 {offsets = [0, 1], sizes = [8, 1], strides = [1, 1]} : vector<8x2xf32> to vector<8x1xf32>
    %134 = vector.broadcast %130 : vector<1x32xf32> to vector<8x32xf32>
    %135 = vector.broadcast %133 : vector<8x1xf32> to vector<8x32xf32>
    %136 = arith.mulf %134, %135 : vector<8x32xf32>
    %137 = arith.addf %129, %136 : vector<8x32xf32>
    %138 = arith.addf %85, %137 : vector<8x32xf32>
    %139 = vector.extract_strided_slice %60 {offsets = [1, 0, 0], sizes = [1, 24, 8], strides = [1, 1, 1]} : vector<2x24x8xf32> to vector<1x24x8xf32>
    %140 = vector.shape_cast %139 : vector<1x24x8xf32> to vector<24x8xf32>
    %cst_62 = arith.constant dense<0.000000e+00> : vector<24x32xf32>
    %141 = tpu.matmul %140, %138, %cst_62 {dimension_numbers = #tpu.dot_dimension_numbers<[1], [0], [0], [1], [0, 0, 1, 1], [], []>} : vector<24x8xf32>, vector<8x32xf32>, vector<24x32xf32> -> vector<24x32xf32>
    %142 = vector.extract_strided_slice %141 {offsets = [0, 0], sizes = [8, 32], strides = [1, 1]} : vector<24x32xf32> to vector<8x32xf32>
    %143 = vector.extract_strided_slice %141 {offsets = [8, 0], sizes = [8, 32], strides = [1, 1]} : vector<24x32xf32> to vector<8x32xf32>
    %144 = vector.extract_strided_slice %141 {offsets = [16, 0], sizes = [8, 32], strides = [1, 1]} : vector<24x32xf32> to vector<8x32xf32>
    "tpu.trace_start"() <{level = 10 : i32, message = "hn,gn->hg"}> : () -> ()
    %cst_63 = arith.constant dense<0.000000e+00> : vector<8x8xf32>
    %145 = tpu.matmul %142, %143, %cst_63 {dimension_numbers = #tpu.dot_dimension_numbers<[1], [1], [0], [0], [0, 0, 1, 0], [], []>} : vector<8x32xf32>, vector<8x32xf32>, vector<8x8xf32> -> vector<8x8xf32>
    "tpu.trace_stop"() : () -> ()
    %cst_64 = arith.constant 0.176776692 : f32
    %146 = vector.broadcast %cst_64 : f32 to vector<8x8xf32>
    %147 = arith.mulf %145, %146 : vector<8x8xf32>
    %cst_65 = arith.constant dense<0xFF800000> : vector<8xf32>
    %148 = vector.multi_reduction <maximumf>, %147, %cst_65 [1] : vector<8x8xf32> to vector<8xf32>
    %149 = vector.shape_cast %148 : vector<8xf32> to vector<8x1xf32>
    %150 = vector.broadcast %149 : vector<8x1xf32> to vector<8x8xf32>
    %151 = arith.subf %147, %150 : vector<8x8xf32>
    %152 = math.exp %151 : vector<8x8xf32>
    %cst_66 = arith.constant dense<0.000000e+00> : vector<8xf32>
    %153 = vector.multi_reduction <add>, %152, %cst_66 [1] : vector<8x8xf32> to vector<8xf32>
    %154 = vector.shape_cast %153 : vector<8xf32> to vector<8x1xf32>
    %155 = vector.broadcast %154 : vector<8x1xf32> to vector<8x8xf32>
    %156 = arith.divf %152, %155 : vector<8x8xf32>
    %cst_67 = arith.constant dense<0.000000e+00> : vector<8x32xf32>
    %157 = tpu.matmul %156, %144, %cst_67 {dimension_numbers = #tpu.dot_dimension_numbers<[1], [0], [0], [1], [0, 0, 1, 1], [], []>} : vector<8x8xf32>, vector<8x32xf32>, vector<8x32xf32> -> vector<8x32xf32>
    %158 = vector.extract_strided_slice %61 {offsets = [1, 0, 0], sizes = [1, 8, 1], strides = [1, 1, 1]} : vector<2x8x1xf32> to vector<1x8x1xf32>
    %159 = vector.shape_cast %158 : vector<1x8x1xf32> to vector<8x1xf32>
    %160 = vector.extract_strided_slice %62 {offsets = [1, 0, 0], sizes = [1, 8, 1], strides = [1, 1, 1]} : vector<2x8x1xf32> to vector<1x8x1xf32>
    %161 = vector.shape_cast %160 : vector<1x8x1xf32> to vector<8x1xf32>
    %cst_68 = arith.constant dense<0.000000e+00> : vector<32xf32>
    %162 = vector.multi_reduction <add>, %157, %cst_68 [0] : vector<8x32xf32> to vector<32xf32>
    %163 = vector.shape_cast %162 : vector<32xf32> to vector<1x32xf32>
    %cst_69 = arith.constant 8.000000e+00 : f32
    %164 = vector.broadcast %cst_69 : f32 to vector<1x32xf32>
    %165 = arith.divf %163, %164 : vector<1x32xf32>
    %166 = vector.broadcast %165 : vector<1x32xf32> to vector<8x32xf32>
    %167 = arith.subf %157, %166 : vector<8x32xf32>
    %168 = arith.mulf %167, %167 : vector<8x32xf32>
    %cst_70 = arith.constant dense<0.000000e+00> : vector<32xf32>
    %169 = vector.multi_reduction <add>, %168, %cst_70 [0] : vector<8x32xf32> to vector<32xf32>
    %170 = vector.shape_cast %169 : vector<32xf32> to vector<1x32xf32>
    %cst_71 = arith.constant 8.000000e+00 : f32
    %171 = vector.broadcast %cst_71 : f32 to vector<1x32xf32>
    %172 = arith.divf %170, %171 : vector<1x32xf32>
    %173 = vector.broadcast %165 : vector<1x32xf32> to vector<8x32xf32>
    %174 = arith.subf %157, %173 : vector<8x32xf32>
    %cst_72 = arith.constant 9.99999974E-6 : f32
    %175 = vector.broadcast %cst_72 : f32 to vector<1x32xf32>
    %176 = arith.addf %172, %175 : vector<1x32xf32>
    %177 = math.rsqrt %176 : vector<1x32xf32>
    %178 = vector.broadcast %177 : vector<1x32xf32> to vector<8x32xf32>
    %179 = arith.mulf %174, %178 : vector<8x32xf32>
    %180 = vector.broadcast %159 : vector<8x1xf32> to vector<8x32xf32>
    %181 = arith.mulf %179, %180 : vector<8x32xf32>
    %182 = vector.broadcast %161 : vector<8x1xf32> to vector<8x32xf32>
    %183 = arith.addf %181, %182 : vector<8x32xf32>
    %184 = vector.extract_strided_slice %63 {offsets = [1, 0, 0], sizes = [1, 2, 8], strides = [1, 1, 1]} : vector<2x2x8xf32> to vector<1x2x8xf32>
    %185 = vector.shape_cast %184 : vector<1x2x8xf32> to vector<2x8xf32>
    %cst_73 = arith.constant dense<0.000000e+00> : vector<2x32xf32>
    %186 = tpu.matmul %185, %183, %cst_73 {dimension_numbers = #tpu.dot_dimension_numbers<[1], [0], [0], [1], [0, 0, 1, 1], [], []>} : vector<2x8xf32>, vector<8x32xf32>, vector<2x32xf32> -> vector<2x32xf32>
    %cst_74 = arith.constant 5.000000e-01 : f32
    %187 = vector.broadcast %cst_74 : f32 to vector<2x32xf32>
    %188 = arith.mulf %187, %186 : vector<2x32xf32>
    %cst_75 = arith.constant 0.707106769 : f32
    %189 = vector.broadcast %cst_75 : f32 to vector<2x32xf32>
    %190 = arith.mulf %186, %189 : vector<2x32xf32>
    %191 = math.erf %190 : vector<2x32xf32>
    %cst_76 = arith.constant 1.000000e+00 : f32
    %192 = vector.broadcast %cst_76 : f32 to vector<2x32xf32>
    %193 = arith.addf %192, %191 : vector<2x32xf32>
    %194 = arith.mulf %188, %193 : vector<2x32xf32>
    %195 = vector.extract_strided_slice %194 {offsets = [0, 0], sizes = [1, 32], strides = [1, 1]} : vector<2x32xf32> to vector<1x32xf32>
    %196 = vector.extract_strided_slice %64 {offsets = [1, 0, 0], sizes = [1, 8, 2], strides = [1, 1, 1]} : vector<2x8x2xf32> to vector<1x8x2xf32>
    %197 = vector.shape_cast %196 : vector<1x8x2xf32> to vector<8x2xf32>
    %198 = vector.extract_strided_slice %197 {offsets = [0, 0], sizes = [8, 1], strides = [1, 1]} : vector<8x2xf32> to vector<8x1xf32>
    %199 = vector.broadcast %195 : vector<1x32xf32> to vector<8x32xf32>
    %200 = vector.broadcast %198 : vector<8x1xf32> to vector<8x32xf32>
    %201 = arith.mulf %199, %200 : vector<8x32xf32>
    %202 = vector.extract_strided_slice %194 {offsets = [1, 0], sizes = [1, 32], strides = [1, 1]} : vector<2x32xf32> to vector<1x32xf32>
    %203 = vector.extract_strided_slice %64 {offsets = [1, 0, 0], sizes = [1, 8, 2], strides = [1, 1, 1]} : vector<2x8x2xf32> to vector<1x8x2xf32>
    %204 = vector.shape_cast %203 : vector<1x8x2xf32> to vector<8x2xf32>
    %205 = vector.extract_strided_slice %204 {offsets = [0, 1], sizes = [8, 1], strides = [1, 1]} : vector<8x2xf32> to vector<8x1xf32>
    %206 = vector.broadcast %202 : vector<1x32xf32> to vector<8x32xf32>
    %207 = vector.broadcast %205 : vector<8x1xf32> to vector<8x32xf32>
    %208 = arith.mulf %206, %207 : vector<8x32xf32>
    %209 = arith.addf %201, %208 : vector<8x32xf32>
    %210 = arith.addf %157, %209 : vector<8x32xf32>
    %cst_77 = arith.constant dense<0.000000e+00> : vector<32xf32>
    %211 = vector.multi_reduction <add>, %210, %cst_77 [0] : vector<8x32xf32> to vector<32xf32>
    %212 = vector.shape_cast %211 : vector<32xf32> to vector<1x32xf32>
    %cst_78 = arith.constant 8.000000e+00 : f32
    %213 = vector.broadcast %cst_78 : f32 to vector<1x32xf32>
    %214 = arith.divf %212, %213 : vector<1x32xf32>
    %c0_79 = arith.constant 0 : index
    %c0_80 = arith.constant 0 : index
    %215 = vector.load %arg20[%c0_79, %c0_80] : memref<2x32xf32, #tpu.memory_space<vmem>>, vector<1x32xf32>
    tpu.vector_store %arg20[%c0_79, %c0_80], %214 {strides = array<i32>} : memref<2x32xf32, #tpu.memory_space<vmem>>, vector<1x32xf32>,
    %216 = vector.extract_strided_slice %59 {offsets = [1, 0, 0], sizes = [1, 8, 32], strides = [1, 1, 1]} : vector<2x8x32xf32> to vector<1x8x32xf32>
    %217 = vector.shape_cast %216 : vector<1x8x32xf32> to vector<8x32xf32>
    %218 = vector.extract_strided_slice %60 {offsets = [0, 0, 0], sizes = [1, 24, 8], strides = [1, 1, 1]} : vector<2x24x8xf32> to vector<1x24x8xf32>
    %219 = vector.shape_cast %218 : vector<1x24x8xf32> to vector<24x8xf32>
    %cst_81 = arith.constant dense<0.000000e+00> : vector<24x32xf32>
    %220 = tpu.matmul %219, %217, %cst_81 {dimension_numbers = #tpu.dot_dimension_numbers<[1], [0], [0], [1], [0, 0, 1, 1], [], []>} : vector<24x8xf32>, vector<8x32xf32>, vector<24x32xf32> -> vector<24x32xf32>
    %221 = vector.extract_strided_slice %220 {offsets = [0, 0], sizes = [8, 32], strides = [1, 1]} : vector<24x32xf32> to vector<8x32xf32>
    %222 = vector.extract_strided_slice %220 {offsets = [8, 0], sizes = [8, 32], strides = [1, 1]} : vector<24x32xf32> to vector<8x32xf32>
    %223 = vector.extract_strided_slice %220 {offsets = [16, 0], sizes = [8, 32], strides = [1, 1]} : vector<24x32xf32> to vector<8x32xf32>
    "tpu.trace_start"() <{level = 10 : i32, message = "hn,gn->hg"}> : () -> ()
    %cst_82 = arith.constant dense<0.000000e+00> : vector<8x8xf32>
    %224 = tpu.matmul %221, %222, %cst_82 {dimension_numbers = #tpu.dot_dimension_numbers<[1], [1], [0], [0], [0, 0, 1, 0], [], []>} : vector<8x32xf32>, vector<8x32xf32>, vector<8x8xf32> -> vector<8x8xf32>
    "tpu.trace_stop"() : () -> ()
    %cst_83 = arith.constant 0.176776692 : f32
    %225 = vector.broadcast %cst_83 : f32 to vector<8x8xf32>
    %226 = arith.mulf %224, %225 : vector<8x8xf32>
    %cst_84 = arith.constant dense<0xFF800000> : vector<8xf32>
    %227 = vector.multi_reduction <maximumf>, %226, %cst_84 [1] : vector<8x8xf32> to vector<8xf32>
    %228 = vector.shape_cast %227 : vector<8xf32> to vector<8x1xf32>
    %229 = vector.broadcast %228 : vector<8x1xf32> to vector<8x8xf32>
    %230 = arith.subf %226, %229 : vector<8x8xf32>
    %231 = math.exp %230 : vector<8x8xf32>
    %cst_85 = arith.constant dense<0.000000e+00> : vector<8xf32>
    %232 = vector.multi_reduction <add>, %231, %cst_85 [1] : vector<8x8xf32> to vector<8xf32>
    %233 = vector.shape_cast %232 : vector<8xf32> to vector<8x1xf32>
    %234 = vector.broadcast %233 : vector<8x1xf32> to vector<8x8xf32>
    %235 = arith.divf %231, %234 : vector<8x8xf32>
    %cst_86 = arith.constant dense<0.000000e+00> : vector<8x32xf32>
    %236 = tpu.matmul %235, %223, %cst_86 {dimension_numbers = #tpu.dot_dimension_numbers<[1], [0], [0], [1], [0, 0, 1, 1], [], []>} : vector<8x8xf32>, vector<8x32xf32>, vector<8x32xf32> -> vector<8x32xf32>
    %237 = vector.extract_strided_slice %61 {offsets = [0, 0, 0], sizes = [1, 8, 1], strides = [1, 1, 1]} : vector<2x8x1xf32> to vector<1x8x1xf32>
    %238 = vector.shape_cast %237 : vector<1x8x1xf32> to vector<8x1xf32>
    %239 = vector.extract_strided_slice %62 {offsets = [0, 0, 0], sizes = [1, 8, 1], strides = [1, 1, 1]} : vector<2x8x1xf32> to vector<1x8x1xf32>
    %240 = vector.shape_cast %239 : vector<1x8x1xf32> to vector<8x1xf32>
    %cst_87 = arith.constant dense<0.000000e+00> : vector<32xf32>
    %241 = vector.multi_reduction <add>, %236, %cst_87 [0] : vector<8x32xf32> to vector<32xf32>
    %242 = vector.shape_cast %241 : vector<32xf32> to vector<1x32xf32>
    %cst_88 = arith.constant 8.000000e+00 : f32
    %243 = vector.broadcast %cst_88 : f32 to vector<1x32xf32>
    %244 = arith.divf %242, %243 : vector<1x32xf32>
    %245 = vector.broadcast %244 : vector<1x32xf32> to vector<8x32xf32>
    %246 = arith.subf %236, %245 : vector<8x32xf32>
    %247 = arith.mulf %246, %246 : vector<8x32xf32>
    %cst_89 = arith.constant dense<0.000000e+00> : vector<32xf32>
    %248 = vector.multi_reduction <add>, %247, %cst_89 [0] : vector<8x32xf32> to vector<32xf32>
    %249 = vector.shape_cast %248 : vector<32xf32> to vector<1x32xf32>
    %cst_90 = arith.constant 8.000000e+00 : f32
    %250 = vector.broadcast %cst_90 : f32 to vector<1x32xf32>
    %251 = arith.divf %249, %250 : vector<1x32xf32>
    %252 = vector.broadcast %244 : vector<1x32xf32> to vector<8x32xf32>
    %253 = arith.subf %236, %252 : vector<8x32xf32>
    %cst_91 = arith.constant 9.99999974E-6 : f32
    %254 = vector.broadcast %cst_91 : f32 to vector<1x32xf32>
    %255 = arith.addf %251, %254 : vector<1x32xf32>
    %256 = math.rsqrt %255 : vector<1x32xf32>
    %257 = vector.broadcast %256 : vector<1x32xf32> to vector<8x32xf32>
    %258 = arith.mulf %253, %257 : vector<8x32xf32>
    %259 = vector.broadcast %238 : vector<8x1xf32> to vector<8x32xf32>
    %260 = arith.mulf %258, %259 : vector<8x32xf32>
    %261 = vector.broadcast %240 : vector<8x1xf32> to vector<8x32xf32>
    %262 = arith.addf %260, %261 : vector<8x32xf32>
    %263 = vector.extract_strided_slice %63 {offsets = [0, 0, 0], sizes = [1, 2, 8], strides = [1, 1, 1]} : vector<2x2x8xf32> to vector<1x2x8xf32>
    %264 = vector.shape_cast %263 : vector<1x2x8xf32> to vector<2x8xf32>
    %cst_92 = arith.constant dense<0.000000e+00> : vector<2x32xf32>
    %265 = tpu.matmul %264, %262, %cst_92 {dimension_numbers = #tpu.dot_dimension_numbers<[1], [0], [0], [1], [0, 0, 1, 1], [], []>} : vector<2x8xf32>, vector<8x32xf32>, vector<2x32xf32> -> vector<2x32xf32>
    %cst_93 = arith.constant 5.000000e-01 : f32
    %266 = vector.broadcast %cst_93 : f32 to vector<2x32xf32>
    %267 = arith.mulf %266, %265 : vector<2x32xf32>
    %cst_94 = arith.constant 0.707106769 : f32
    %268 = vector.broadcast %cst_94 : f32 to vector<2x32xf32>
    %269 = arith.mulf %265, %268 : vector<2x32xf32>
    %270 = math.erf %269 : vector<2x32xf32>
    %cst_95 = arith.constant 1.000000e+00 : f32
    %271 = vector.broadcast %cst_95 : f32 to vector<2x32xf32>
    %272 = arith.addf %271, %270 : vector<2x32xf32>
    %273 = arith.mulf %267, %272 : vector<2x32xf32>
    %274 = vector.extract_strided_slice %273 {offsets = [0, 0], sizes = [1, 32], strides = [1, 1]} : vector<2x32xf32> to vector<1x32xf32>
    %275 = vector.extract_strided_slice %64 {offsets = [0, 0, 0], sizes = [1, 8, 2], strides = [1, 1, 1]} : vector<2x8x2xf32> to vector<1x8x2xf32>
    %276 = vector.shape_cast %275 : vector<1x8x2xf32> to vector<8x2xf32>
    %277 = vector.extract_strided_slice %276 {offsets = [0, 0], sizes = [8, 1], strides = [1, 1]} : vector<8x2xf32> to vector<8x1xf32>
    %278 = vector.broadcast %274 : vector<1x32xf32> to vector<8x32xf32>
    %279 = vector.broadcast %277 : vector<8x1xf32> to vector<8x32xf32>
    %280 = arith.mulf %278, %279 : vector<8x32xf32>
    %281 = vector.extract_strided_slice %273 {offsets = [1, 0], sizes = [1, 32], strides = [1, 1]} : vector<2x32xf32> to vector<1x32xf32>
    %282 = vector.extract_strided_slice %64 {offsets = [0, 0, 0], sizes = [1, 8, 2], strides = [1, 1, 1]} : vector<2x8x2xf32> to vector<1x8x2xf32>
    %283 = vector.shape_cast %282 : vector<1x8x2xf32> to vector<8x2xf32>
    %284 = vector.extract_strided_slice %283 {offsets = [0, 1], sizes = [8, 1], strides = [1, 1]} : vector<8x2xf32> to vector<8x1xf32>
    %285 = vector.broadcast %281 : vector<1x32xf32> to vector<8x32xf32>
    %286 = vector.broadcast %284 : vector<8x1xf32> to vector<8x32xf32>
    %287 = arith.mulf %285, %286 : vector<8x32xf32>
    %288 = arith.addf %280, %287 : vector<8x32xf32>
    %289 = arith.addf %236, %288 : vector<8x32xf32>
    %290 = vector.extract_strided_slice %60 {offsets = [1, 0, 0], sizes = [1, 24, 8], strides = [1, 1, 1]} : vector<2x24x8xf32> to vector<1x24x8xf32>
    %291 = vector.shape_cast %290 : vector<1x24x8xf32> to vector<24x8xf32>
    %cst_96 = arith.constant dense<0.000000e+00> : vector<24x32xf32>
    %292 = tpu.matmul %291, %289, %cst_96 {dimension_numbers = #tpu.dot_dimension_numbers<[1], [0], [0], [1], [0, 0, 1, 1], [], []>} : vector<24x8xf32>, vector<8x32xf32>, vector<24x32xf32> -> vector<24x32xf32>
    %293 = vector.extract_strided_slice %292 {offsets = [0, 0], sizes = [8, 32], strides = [1, 1]} : vector<24x32xf32> to vector<8x32xf32>
    %294 = vector.extract_strided_slice %292 {offsets = [8, 0], sizes = [8, 32], strides = [1, 1]} : vector<24x32xf32> to vector<8x32xf32>
    %295 = vector.extract_strided_slice %292 {offsets = [16, 0], sizes = [8, 32], strides = [1, 1]} : vector<24x32xf32> to vector<8x32xf32>
    "tpu.trace_start"() <{level = 10 : i32, message = "hn,gn->hg"}> : () -> ()
    %cst_97 = arith.constant dense<0.000000e+00> : vector<8x8xf32>
    %296 = tpu.matmul %293, %294, %cst_97 {dimension_numbers = #tpu.dot_dimension_numbers<[1], [1], [0], [0], [0, 0, 1, 0], [], []>} : vector<8x32xf32>, vector<8x32xf32>, vector<8x8xf32> -> vector<8x8xf32>
    "tpu.trace_stop"() : () -> ()
    %cst_98 = arith.constant 0.176776692 : f32
    %297 = vector.broadcast %cst_98 : f32 to vector<8x8xf32>
    %298 = arith.mulf %296, %297 : vector<8x8xf32>
    %cst_99 = arith.constant dense<0xFF800000> : vector<8xf32>
    %299 = vector.multi_reduction <maximumf>, %298, %cst_99 [1] : vector<8x8xf32> to vector<8xf32>
    %300 = vector.shape_cast %299 : vector<8xf32> to vector<8x1xf32>
    %301 = vector.broadcast %300 : vector<8x1xf32> to vector<8x8xf32>
    %302 = arith.subf %298, %301 : vector<8x8xf32>
    %303 = math.exp %302 : vector<8x8xf32>
    %cst_100 = arith.constant dense<0.000000e+00> : vector<8xf32>
    %304 = vector.multi_reduction <add>, %303, %cst_100 [1] : vector<8x8xf32> to vector<8xf32>
    %305 = vector.shape_cast %304 : vector<8xf32> to vector<8x1xf32>
    %306 = vector.broadcast %305 : vector<8x1xf32> to vector<8x8xf32>
    %307 = arith.divf %303, %306 : vector<8x8xf32>
    %cst_101 = arith.constant dense<0.000000e+00> : vector<8x32xf32>
    %308 = tpu.matmul %307, %295, %cst_101 {dimension_numbers = #tpu.dot_dimension_numbers<[1], [0], [0], [1], [0, 0, 1, 1], [], []>} : vector<8x8xf32>, vector<8x32xf32>, vector<8x32xf32> -> vector<8x32xf32>
    %309 = vector.extract_strided_slice %61 {offsets = [1, 0, 0], sizes = [1, 8, 1], strides = [1, 1, 1]} : vector<2x8x1xf32> to vector<1x8x1xf32>
    %310 = vector.shape_cast %309 : vector<1x8x1xf32> to vector<8x1xf32>
    %311 = vector.extract_strided_slice %62 {offsets = [1, 0, 0], sizes = [1, 8, 1], strides = [1, 1, 1]} : vector<2x8x1xf32> to vector<1x8x1xf32>
    %312 = vector.shape_cast %311 : vector<1x8x1xf32> to vector<8x1xf32>
    %cst_102 = arith.constant dense<0.000000e+00> : vector<32xf32>
    %313 = vector.multi_reduction <add>, %308, %cst_102 [0] : vector<8x32xf32> to vector<32xf32>
    %314 = vector.shape_cast %313 : vector<32xf32> to vector<1x32xf32>
    %cst_103 = arith.constant 8.000000e+00 : f32
    %315 = vector.broadcast %cst_103 : f32 to vector<1x32xf32>
    %316 = arith.divf %314, %315 : vector<1x32xf32>
    %317 = vector.broadcast %316 : vector<1x32xf32> to vector<8x32xf32>
    %318 = arith.subf %308, %317 : vector<8x32xf32>
    %319 = arith.mulf %318, %318 : vector<8x32xf32>
    %cst_104 = arith.constant dense<0.000000e+00> : vector<32xf32>
    %320 = vector.multi_reduction <add>, %319, %cst_104 [0] : vector<8x32xf32> to vector<32xf32>
    %321 = vector.shape_cast %320 : vector<32xf32> to vector<1x32xf32>
    %cst_105 = arith.constant 8.000000e+00 : f32
    %322 = vector.broadcast %cst_105 : f32 to vector<1x32xf32>
    %323 = arith.divf %321, %322 : vector<1x32xf32>
    %324 = vector.broadcast %316 : vector<1x32xf32> to vector<8x32xf32>
    %325 = arith.subf %308, %324 : vector<8x32xf32>
    %cst_106 = arith.constant 9.99999974E-6 : f32
    %326 = vector.broadcast %cst_106 : f32 to vector<1x32xf32>
    %327 = arith.addf %323, %326 : vector<1x32xf32>
    %328 = math.rsqrt %327 : vector<1x32xf32>
    %329 = vector.broadcast %328 : vector<1x32xf32> to vector<8x32xf32>
    %330 = arith.mulf %325, %329 : vector<8x32xf32>
    %331 = vector.broadcast %310 : vector<8x1xf32> to vector<8x32xf32>
    %332 = arith.mulf %330, %331 : vector<8x32xf32>
    %333 = vector.broadcast %312 : vector<8x1xf32> to vector<8x32xf32>
    %334 = arith.addf %332, %333 : vector<8x32xf32>
    %335 = vector.extract_strided_slice %63 {offsets = [1, 0, 0], sizes = [1, 2, 8], strides = [1, 1, 1]} : vector<2x2x8xf32> to vector<1x2x8xf32>
    %336 = vector.shape_cast %335 : vector<1x2x8xf32> to vector<2x8xf32>
    %cst_107 = arith.constant dense<0.000000e+00> : vector<2x32xf32>
    %337 = tpu.matmul %336, %334, %cst_107 {dimension_numbers = #tpu.dot_dimension_numbers<[1], [0], [0], [1], [0, 0, 1, 1], [], []>} : vector<2x8xf32>, vector<8x32xf32>, vector<2x32xf32> -> vector<2x32xf32>
    %cst_108 = arith.constant 5.000000e-01 : f32
    %338 = vector.broadcast %cst_108 : f32 to vector<2x32xf32>
    %339 = arith.mulf %338, %337 : vector<2x32xf32>
    %cst_109 = arith.constant 0.707106769 : f32
    %340 = vector.broadcast %cst_109 : f32 to vector<2x32xf32>
    %341 = arith.mulf %337, %340 : vector<2x32xf32>
    %342 = math.erf %341 : vector<2x32xf32>
    %cst_110 = arith.constant 1.000000e+00 : f32
    %343 = vector.broadcast %cst_110 : f32 to vector<2x32xf32>
    %344 = arith.addf %343, %342 : vector<2x32xf32>
    %345 = arith.mulf %339, %344 : vector<2x32xf32>
    %346 = vector.extract_strided_slice %345 {offsets = [0, 0], sizes = [1, 32], strides = [1, 1]} : vector<2x32xf32> to vector<1x32xf32>
    %347 = vector.extract_strided_slice %64 {offsets = [1, 0, 0], sizes = [1, 8, 2], strides = [1, 1, 1]} : vector<2x8x2xf32> to vector<1x8x2xf32>
    %348 = vector.shape_cast %347 : vector<1x8x2xf32> to vector<8x2xf32>
    %349 = vector.extract_strided_slice %348 {offsets = [0, 0], sizes = [8, 1], strides = [1, 1]} : vector<8x2xf32> to vector<8x1xf32>
    %350 = vector.broadcast %346 : vector<1x32xf32> to vector<8x32xf32>
    %351 = vector.broadcast %349 : vector<8x1xf32> to vector<8x32xf32>
    %352 = arith.mulf %350, %351 : vector<8x32xf32>
    %353 = vector.extract_strided_slice %345 {offsets = [1, 0], sizes = [1, 32], strides = [1, 1]} : vector<2x32xf32> to vector<1x32xf32>
    %354 = vector.extract_strided_slice %64 {offsets = [1, 0, 0], sizes = [1, 8, 2], strides = [1, 1, 1]} : vector<2x8x2xf32> to vector<1x8x2xf32>
    %355 = vector.shape_cast %354 : vector<1x8x2xf32> to vector<8x2xf32>
    %356 = vector.extract_strided_slice %355 {offsets = [0, 1], sizes = [8, 1], strides = [1, 1]} : vector<8x2xf32> to vector<8x1xf32>
    %357 = vector.broadcast %353 : vector<1x32xf32> to vector<8x32xf32>
    %358 = vector.broadcast %356 : vector<8x1xf32> to vector<8x32xf32>
    %359 = arith.mulf %357, %358 : vector<8x32xf32>
    %360 = arith.addf %352, %359 : vector<8x32xf32>
    %361 = arith.addf %308, %360 : vector<8x32xf32>
    %cst_111 = arith.constant dense<0.000000e+00> : vector<32xf32>
    %362 = vector.multi_reduction <add>, %361, %cst_111 [0] : vector<8x32xf32> to vector<32xf32>
    %363 = vector.shape_cast %362 : vector<32xf32> to vector<1x32xf32>
    %cst_112 = arith.constant 8.000000e+00 : f32
    %364 = vector.broadcast %cst_112 : f32 to vector<1x32xf32>
    %365 = arith.divf %363, %364 : vector<1x32xf32>
    %c1_113 = arith.constant 1 : index
    %c0_114 = arith.constant 0 : index
    %366 = vector.load %arg20[%c1_113, %c0_114] : memref<2x32xf32, #tpu.memory_space<vmem>>, vector<1x32xf32>
    tpu.vector_store %arg20[%c1_113, %c0_114], %365 {strides = array<i32>} : memref<2x32xf32, #tpu.memory_space<vmem>>, vector<1x32xf32>,
    %c0_115 = arith.constant 0 : index
    %c0_116 = arith.constant 0 : index
    %367 = vector.load %arg20[%c0_115, %c0_116] : memref<2x32xf32, #tpu.memory_space<vmem>>, vector<2x32xf32>
    %c0_117 = arith.constant 0 : index
    %c0_118 = arith.constant 0 : index
    %368 = vector.load %arg10[%c0_117, %c0_118] : memref<1x32xf32, #tpu.memory_space<vmem>>, vector<1x32xf32>
    %c0_119 = arith.constant 0 : index
    %c0_120 = arith.constant 0 : index
    %369 = vector.load %arg11[%c0_119, %c0_120] : memref<1x32xf32, #tpu.memory_space<vmem>>, vector<1x32xf32>
    %cst_121 = arith.constant dense<0.000000e+00> : vector<2xf32>
    %370 = vector.multi_reduction <add>, %367, %cst_121 [1] : vector<2x32xf32> to vector<2xf32>
    %371 = vector.shape_cast %370 : vector<2xf32> to vector<2x1xf32>
    %cst_122 = arith.constant 3.200000e+01 : f32
    %372 = vector.broadcast %cst_122 : f32 to vector<2x1xf32>
    %373 = arith.divf %371, %372 : vector<2x1xf32>
    %374 = vector.broadcast %373 : vector<2x1xf32> to vector<2x32xf32>
    %375 = arith.subf %367, %374 : vector<2x32xf32>
    %376 = arith.mulf %375, %375 : vector<2x32xf32>
    %cst_123 = arith.constant dense<0.000000e+00> : vector<2xf32>
    %377 = vector.multi_reduction <add>, %376, %cst_123 [1] : vector<2x32xf32> to vector<2xf32>
    %378 = vector.shape_cast %377 : vector<2xf32> to vector<2x1xf32>
    %cst_124 = arith.constant 3.200000e+01 : f32
    %379 = vector.broadcast %cst_124 : f32 to vector<2x1xf32>
    %380 = arith.divf %378, %379 : vector<2x1xf32>
    %381 = vector.broadcast %373 : vector<2x1xf32> to vector<2x32xf32>
    %382 = arith.subf %367, %381 : vector<2x32xf32>
    %cst_125 = arith.constant 9.99999974E-6 : f32
    %383 = vector.broadcast %cst_125 : f32 to vector<2x1xf32>
    %384 = arith.addf %380, %383 : vector<2x1xf32>
    %385 = math.rsqrt %384 : vector<2x1xf32>
    %386 = vector.broadcast %385 : vector<2x1xf32> to vector<2x32xf32>
    %387 = arith.mulf %382, %386 : vector<2x32xf32>
    %388 = vector.broadcast %368 : vector<1x32xf32> to vector<2x32xf32>
    %389 = arith.mulf %387, %388 : vector<2x32xf32>
    %390 = vector.broadcast %369 : vector<1x32xf32> to vector<2x32xf32>
    %391 = arith.addf %389, %390 : vector<2x32xf32>
    %c0_126 = arith.constant 0 : index
    %c0_127 = arith.constant 0 : index
    %392 = vector.load %arg12[%c0_126, %c0_127] : memref<32x8xf32, #tpu.memory_space<vmem>>, vector<32x8xf32>
    %cst_128 = arith.constant dense<0.000000e+00> : vector<2x8xf32>
    %393 = tpu.matmul %391, %392, %cst_128 {dimension_numbers = #tpu.dot_dimension_numbers<[1], [0], [0], [1], [0, 0, 1, 1], [], []>} : vector<2x32xf32>, vector<32x8xf32>, vector<2x8xf32> -> vector<2x8xf32>
    %cst_129 = arith.constant 5.000000e-01 : f32
    %394 = vector.broadcast %cst_129 : f32 to vector<2x8xf32>
    %395 = arith.mulf %394, %393 : vector<2x8xf32>
    %cst_130 = arith.constant 0.707106769 : f32
    %396 = vector.broadcast %cst_130 : f32 to vector<2x8xf32>
    %397 = arith.mulf %393, %396 : vector<2x8xf32>
    %398 = math.erf %397 : vector<2x8xf32>
    %cst_131 = arith.constant 1.000000e+00 : f32
    %399 = vector.broadcast %cst_131 : f32 to vector<2x8xf32>
    %400 = arith.addf %399, %398 : vector<2x8xf32>
    %401 = arith.mulf %395, %400 : vector<2x8xf32>
    %c0_132 = arith.constant 0 : index
    %c0_133 = arith.constant 0 : index
    %402 = vector.load %arg13[%c0_132, %c0_133] : memref<8x32xf32, #tpu.memory_space<vmem>>, vector<8x32xf32>
    %cst_134 = arith.constant dense<0.000000e+00> : vector<2x32xf32>
    %403 = tpu.matmul %401, %402, %cst_134 {dimension_numbers = #tpu.dot_dimension_numbers<[1], [0], [0], [1], [0, 0, 1, 1], [], []>} : vector<2x8xf32>, vector<8x32xf32>, vector<2x32xf32> -> vector<2x32xf32>
    %c0_135 = arith.constant 0 : index
    %c0_136 = arith.constant 0 : index
    %404 = vector.load %arg14[%c0_135, %c0_136] : memref<1x32xf32, #tpu.memory_space<vmem>>, vector<1x32xf32>
    %c0_137 = arith.constant 0 : index
    %c0_138 = arith.constant 0 : index
    %405 = vector.load %arg15[%c0_137, %c0_138] : memref<1x32xf32, #tpu.memory_space<vmem>>, vector<1x32xf32>
    %cst_139 = arith.constant dense<0.000000e+00> : vector<2xf32>
    %406 = vector.multi_reduction <add>, %403, %cst_139 [1] : vector<2x32xf32> to vector<2xf32>
    %407 = vector.shape_cast %406 : vector<2xf32> to vector<2x1xf32>
    %cst_140 = arith.constant 3.200000e+01 : f32
    %408 = vector.broadcast %cst_140 : f32 to vector<2x1xf32>
    %409 = arith.divf %407, %408 : vector<2x1xf32>
    %410 = vector.broadcast %409 : vector<2x1xf32> to vector<2x32xf32>
    %411 = arith.subf %403, %410 : vector<2x32xf32>
    %412 = arith.mulf %411, %411 : vector<2x32xf32>
    %cst_141 = arith.constant dense<0.000000e+00> : vector<2xf32>
    %413 = vector.multi_reduction <add>, %412, %cst_141 [1] : vector<2x32xf32> to vector<2xf32>
    %414 = vector.shape_cast %413 : vector<2xf32> to vector<2x1xf32>
    %cst_142 = arith.constant 3.200000e+01 : f32
    %415 = vector.broadcast %cst_142 : f32 to vector<2x1xf32>
    %416 = arith.divf %414, %415 : vector<2x1xf32>
    %417 = vector.broadcast %409 : vector<2x1xf32> to vector<2x32xf32>
    %418 = arith.subf %403, %417 : vector<2x32xf32>
    %cst_143 = arith.constant 9.99999974E-6 : f32
    %419 = vector.broadcast %cst_143 : f32 to vector<2x1xf32>
    %420 = arith.addf %416, %419 : vector<2x1xf32>
    %421 = math.rsqrt %420 : vector<2x1xf32>
    %422 = vector.broadcast %421 : vector<2x1xf32> to vector<2x32xf32>
    %423 = arith.mulf %418, %422 : vector<2x32xf32>
    %424 = vector.broadcast %404 : vector<1x32xf32> to vector<2x32xf32>
    %425 = arith.mulf %423, %424 : vector<2x32xf32>
    %426 = vector.broadcast %405 : vector<1x32xf32> to vector<2x32xf32>
    %427 = arith.addf %425, %426 : vector<2x32xf32>
    %c0_144 = arith.constant 0 : index
    %c0_145 = arith.constant 0 : index
    %428 = vector.load %arg16[%c0_144, %c0_145] : memref<32x1xf32, #tpu.memory_space<vmem>>, vector<32x1xf32>
    %cst_146 = arith.constant dense<0.000000e+00> : vector<2x1xf32>
    %429 = tpu.matmul %427, %428, %cst_146 {dimension_numbers = #tpu.dot_dimension_numbers<[1], [0], [0], [1], [0, 0, 1, 1], [], []>} : vector<2x32xf32>, vector<32x1xf32>, vector<2x1xf32> -> vector<2x1xf32>
    %c0_147 = arith.constant 0 : index
    %c0_148 = arith.constant 0 : index
    %430 = vector.load %arg17[%c0_147, %c0_148] : memref<1x1xf32, #tpu.memory_space<vmem>>, vector<1x1xf32>
    %431 = vector.broadcast %430 : vector<1x1xf32> to vector<2x1xf32>
    %432 = arith.addf %429, %431 : vector<2x1xf32>
    %c0_149 = arith.constant 0 : index
    %c0_150 = arith.constant 0 : index
    %433 = vector.load %arg18[%c0_149, %c0_150] : memref<2x1xf32, #tpu.memory_space<vmem>>, vector<2x1xf32>
    tpu.vector_store %arg18[%c0_149, %c0_150], %432 {strides = array<i32>} : memref<2x1xf32, #tpu.memory_space<vmem>>, vector<2x1xf32>,
    return
  }
  func.func @transform_0(%arg0: i32) -> (i32, i32) {
    %c0_i32 = arith.constant 0 : i32
    %c0_i32_0 = arith.constant 0 : i32
    return %arg0, %c0_i32 : i32, i32
  }
  func.func @transform_1(%arg0: i32) -> (i32, i32) {
    %c0_i32 = arith.constant 0 : i32
    %c0_i32_0 = arith.constant 0 : i32
    %c0_i32_1 = arith.constant 0 : i32
    return %c0_i32, %c0_i32_0 : i32, i32
  }
  func.func @transform_2(%arg0: i32) -> (i32, i32) {
    %c0_i32 = arith.constant 0 : i32
    %c0_i32_0 = arith.constant 0 : i32
    %c0_i32_1 = arith.constant 0 : i32
    return %c0_i32, %c0_i32_0 : i32, i32
  }
  func.func @transform_3(%arg0: i32) -> (i32, i32) {
    %c0_i32 = arith.constant 0 : i32
    %c0_i32_0 = arith.constant 0 : i32
    %c0_i32_1 = arith.constant 0 : i32
    return %c0_i32, %c0_i32_0 : i32, i32
  }
  func.func @transform_4(%arg0: i32) -> (i32, i32, i32) {
    %c0_i32 = arith.constant 0 : i32
    %c0_i32_0 = arith.constant 0 : i32
    %c0_i32_1 = arith.constant 0 : i32
    %c0_i32_2 = arith.constant 0 : i32
    return %c0_i32, %c0_i32_0, %c0_i32_1 : i32, i32, i32
  }
  func.func @transform_5(%arg0: i32) -> (i32, i32, i32) {
    %c0_i32 = arith.constant 0 : i32
    %c0_i32_0 = arith.constant 0 : i32
    %c0_i32_1 = arith.constant 0 : i32
    %c0_i32_2 = arith.constant 0 : i32
    return %c0_i32, %c0_i32_0, %c0_i32_1 : i32, i32, i32
  }
  func.func @transform_6(%arg0: i32) -> (i32, i32, i32) {
    %c0_i32 = arith.constant 0 : i32
    %c0_i32_0 = arith.constant 0 : i32
    %c0_i32_1 = arith.constant 0 : i32
    %c0_i32_2 = arith.constant 0 : i32
    return %c0_i32, %c0_i32_0, %c0_i32_1 : i32, i32, i32
  }
  func.func @transform_7(%arg0: i32) -> (i32, i32, i32) {
    %c0_i32 = arith.constant 0 : i32
    %c0_i32_0 = arith.constant 0 : i32
    %c0_i32_1 = arith.constant 0 : i32
    %c0_i32_2 = arith.constant 0 : i32
    return %c0_i32, %c0_i32_0, %c0_i32_1 : i32, i32, i32
  }
  func.func @transform_8(%arg0: i32) -> (i32, i32, i32) {
    %c0_i32 = arith.constant 0 : i32
    %c0_i32_0 = arith.constant 0 : i32
    %c0_i32_1 = arith.constant 0 : i32
    %c0_i32_2 = arith.constant 0 : i32
    return %c0_i32, %c0_i32_0, %c0_i32_1 : i32, i32, i32
  }
  func.func @transform_9(%arg0: i32) -> (i32, i32) {
    %c0_i32 = arith.constant 0 : i32
    %c0_i32_0 = arith.constant 0 : i32
    %c0_i32_1 = arith.constant 0 : i32
    return %c0_i32, %c0_i32_0 : i32, i32
  }
  func.func @transform_10(%arg0: i32) -> (i32, i32) {
    %c0_i32 = arith.constant 0 : i32
    %c0_i32_0 = arith.constant 0 : i32
    %c0_i32_1 = arith.constant 0 : i32
    return %c0_i32, %c0_i32_0 : i32, i32
  }
  func.func @transform_11(%arg0: i32) -> (i32, i32) {
    %c0_i32 = arith.constant 0 : i32
    %c0_i32_0 = arith.constant 0 : i32
    %c0_i32_1 = arith.constant 0 : i32
    return %c0_i32, %c0_i32_0 : i32, i32
  }
  func.func @transform_12(%arg0: i32) -> (i32, i32) {
    %c0_i32 = arith.constant 0 : i32
    %c0_i32_0 = arith.constant 0 : i32
    %c0_i32_1 = arith.constant 0 : i32
    return %c0_i32, %c0_i32_0 : i32, i32
  }
  func.func @transform_13(%arg0: i32) -> (i32, i32) {
    %c0_i32 = arith.constant 0 : i32
    %c0_i32_0 = arith.constant 0 : i32
    %c0_i32_1 = arith.constant 0 : i32
    return %c0_i32, %c0_i32_0 : i32, i32
  }
  func.func @transform_14(%arg0: i32) -> (i32, i32) {
    %c0_i32 = arith.constant 0 : i32
    %c0_i32_0 = arith.constant 0 : i32
    %c0_i32_1 = arith.constant 0 : i32
    return %c0_i32, %c0_i32_0 : i32, i32
  }
  func.func @transform_15(%arg0: i32) -> (i32, i32) {
    %c0_i32 = arith.constant 0 : i32
    %c0_i32_0 = arith.constant 0 : i32
    %c0_i32_1 = arith.constant 0 : i32
    return %c0_i32, %c0_i32_0 : i32, i32
  }
  func.func @transform_16(%arg0: i32) -> (i32, i32) {
    %c0_i32 = arith.constant 0 : i32
    %c0_i32_0 = arith.constant 0 : i32
    %c0_i32_1 = arith.constant 0 : i32
    return %c0_i32, %c0_i32_0 : i32, i32
  }
  func.func @transform_17(%arg0: i32) -> (i32, i32) {
    %c0_i32 = arith.constant 0 : i32
    %c0_i32_0 = arith.constant 0 : i32
    return %arg0, %c0_i32 : i32, i32
  }
}

</mosaic_0001>

<llo_original>
// kernel: transformer_forward.1
$region0: #{transformer_forward.1}
  #allocation0 [shape = 'u32[]', space=smem, size = 0x4, offset = 0x4, fixed_abs, tag = 'smem constant byte address 0x4 - core index']
  #allocation1 [shape = 'u32[72,128]{1,0:T(1,128)}', space=vmem, size = 0x9000, scoped, tag = 'internal scratch']
  #allocation2 [shape = 'f32[2,8,32]{2,1,0:T(8,128)}', space=vmem, size = 0x2000, scoped, tag = 'scratch operand']
  #allocation3 [shape = 'f32[2,32]{1,0:T(2,128)}', space=vmem, size = 0x400, scoped, tag = 'scratch operand']
  #allocation4 [shape = 'f32[1,1]{1,0:T(1,128)S(1)}', space=vmem, size = 0x200, scoped, tag = 'scoped memory for transformer_forward.1']
  %s0 = inlined_call_operand.vmem [shape: f32[2,64], index: 0, kind: input, shape index: {}]
  %s1 = inlined_call_operand.vmem [shape: f32[64,256], index: 1, kind: input, shape index: {}]
  %s2 = inlined_call_operand.vmem [shape: f32[1,256], index: 2, kind: input, shape index: {}]
  %s3 = inlined_call_operand.vmem [shape: f32[1,256], index: 3, kind: input, shape index: {}]
  %s4 = inlined_call_operand.vmem [shape: f32[2,24,8], index: 4, kind: input, shape index: {}]
  %s5 = inlined_call_operand.vmem [shape: f32[2,8,1], index: 5, kind: input, shape index: {}]
  %s6 = inlined_call_operand.vmem [shape: f32[2,8,1], index: 6, kind: input, shape index: {}]
  %s7 = inlined_call_operand.vmem [shape: f32[2,2,8], index: 7, kind: input, shape index: {}]
  %s8 = inlined_call_operand.vmem [shape: f32[2,8,2], index: 8, kind: input, shape index: {}]
  %s9 = inlined_call_operand.vmem [shape: f32[1,32], index: 9, kind: input, shape index: {}]
  %s10 = inlined_call_operand.vmem [shape: f32[1,32], index: 10, kind: input, shape index: {}]
  %s11 = inlined_call_operand.vmem [shape: f32[32,8], index: 11, kind: input, shape index: {}]
  %s12 = inlined_call_operand.vmem [shape: f32[8,32], index: 12, kind: input, shape index: {}]
  %s13 = inlined_call_operand.vmem [shape: f32[1,32], index: 13, kind: input, shape index: {}]
  %s14 = inlined_call_operand.vmem [shape: f32[1,32], index: 14, kind: input, shape index: {}]
  %s15 = inlined_call_operand.vmem [shape: f32[32,1], index: 15, kind: input, shape index: {}]
  %s16 = inlined_call_operand.<no memory space> [shape: f32[1,1], index: 16, kind: input, shape index: {}]
  %s17 = inlined_call_operand.vmem [shape: f32[2,1], index: 17, kind: output, shape index: {}]
  %s18 = sld [smem:[#allocation0]]
  $region78: #{transformer_forward.1} parent=0
    _
  %s20 = ssub.s32 1, %s18
  %s21 = scalar_select 0, %s20, %s18
  %v22 = vstv %s16
  %23 = vst [vmem:[#allocation4] sm:$0x1] %v22
  // Predicated region
  $region2: #{transformer_forward.1} parent=0 // pred_check
    _
  $region3: #{transformer_forward.1} parent=0 // pred_check_branch
    %25 = sbr.rel (0) target = $region5
  $region4: #{transformer_forward.1} parent=0 // pred_region
    _
  $region5: #{transformer_forward.1} parent=0 // pred_fallthru
    _
  // Predicated region
  $region6: #{transformer_forward.1} parent=0 // pred_check
    _
  $region7: #{transformer_forward.1} parent=0 // pred_check_branch
    %27 = sbr.rel (0) target = $region9
  $region8: #{transformer_forward.1} parent=0 // pred_region
    _
  $region9: #{transformer_forward.1} parent=0 // pred_fallthru
    _
  // Predicated region
  $region10: #{transformer_forward.1} parent=0 // pred_check
    _
  $region11: #{transformer_forward.1} parent=0 // pred_check_branch
    %29 = sbr.rel (0) target = $region13
  $region12: #{transformer_forward.1} parent=0 // pred_region
    _
  $region13: #{transformer_forward.1} parent=0 // pred_fallthru
    _
  // Predicated region
  $region14: #{transformer_forward.1} parent=0 // pred_check
    _
  $region15: #{transformer_forward.1} parent=0 // pred_check_branch
    %31 = sbr.rel (0) target = $region17
  $region16: #{transformer_forward.1} parent=0 // pred_region
    _
  $region17: #{transformer_forward.1} parent=0 // pred_fallthru
    _
  // Predicated region
  $region18: #{transformer_forward.1} parent=0 // pred_check
    _
  $region19: #{transformer_forward.1} parent=0 // pred_check_branch
    %33 = sbr.rel (0) target = $region21
  $region20: #{transformer_forward.1} parent=0 // pred_region
    _
  $region21: #{transformer_forward.1} parent=0 // pred_fallthru
    _
  // Predicated region
  $region22: #{transformer_forward.1} parent=0 // pred_check
    _
  $region23: #{transformer_forward.1} parent=0 // pred_check_branch
    %35 = sbr.rel (0) target = $region25
  $region24: #{transformer_forward.1} parent=0 // pred_region
    _
  $region25: #{transformer_forward.1} parent=0 // pred_fallthru
    _
  // Predicated region
  $region26: #{transformer_forward.1} parent=0 // pred_check
    _
  $region27: #{transformer_forward.1} parent=0 // pred_check_branch
    %37 = sbr.rel (0) target = $region29
  $region28: #{transformer_forward.1} parent=0 // pred_region
    _
  $region29: #{transformer_forward.1} parent=0 // pred_fallthru
    _
  // Predicated region
  $region30: #{transformer_forward.1} parent=0 // pred_check
    _
  $region31: #{transformer_forward.1} parent=0 // pred_check_branch
    %39 = sbr.rel (0) target = $region33
  $region32: #{transformer_forward.1} parent=0 // pred_region
    _
  $region33: #{transformer_forward.1} parent=0 // pred_fallthru
    _
  // Predicated region
  $region34: #{transformer_forward.1} parent=0 // pred_check
    _
  $region35: #{transformer_forward.1} parent=0 // pred_check_branch
    %41 = sbr.rel (0) target = $region37
  $region36: #{transformer_forward.1} parent=0 // pred_region
    _
  $region37: #{transformer_forward.1} parent=0 // pred_fallthru
    _
  // Predicated region
  $region38: #{transformer_forward.1} parent=0 // pred_check
    _
  $region39: #{transformer_forward.1} parent=0 // pred_check_branch
    %43 = sbr.rel (0) target = $region41
  $region40: #{transformer_forward.1} parent=0 // pred_region
    _
  $region41: #{transformer_forward.1} parent=0 // pred_fallthru
    _
  // Predicated region
  $region42: #{transformer_forward.1} parent=0 // pred_check
    _
  $region43: #{transformer_forward.1} parent=0 // pred_check_branch
    %45 = sbr.rel (0) target = $region45
  $region44: #{transformer_forward.1} parent=0 // pred_region
    _
  $region45: #{transformer_forward.1} parent=0 // pred_fallthru
    _
  // Predicated region
  $region46: #{transformer_forward.1} parent=0 // pred_check
    _
  $region47: #{transformer_forward.1} parent=0 // pred_check_branch
    %47 = sbr.rel (0) target = $region49
  $region48: #{transformer_forward.1} parent=0 // pred_region
    _
  $region49: #{transformer_forward.1} parent=0 // pred_fallthru
    _
  // Predicated region
  $region50: #{transformer_forward.1} parent=0 // pred_check
    _
  $region51: #{transformer_forward.1} parent=0 // pred_check_branch
    %49 = sbr.rel (0) target = $region53
  $region52: #{transformer_forward.1} parent=0 // pred_region
    _
  $region53: #{transformer_forward.1} parent=0 // pred_fallthru
    _
  // Predicated region
  $region54: #{transformer_forward.1} parent=0 // pred_check
    _
  $region55: #{transformer_forward.1} parent=0 // pred_check_branch
    %51 = sbr.rel (0) target = $region57
  $region56: #{transformer_forward.1} parent=0 // pred_region
    _
  $region57: #{transformer_forward.1} parent=0 // pred_fallthru
    _
  // Predicated region
  $region58: #{transformer_forward.1} parent=0 // pred_check
    _
  $region59: #{transformer_forward.1} parent=0 // pred_check_branch
    %53 = sbr.rel (0) target = $region61
  $region60: #{transformer_forward.1} parent=0 // pred_region
    _
  $region61: #{transformer_forward.1} parent=0 // pred_fallthru
    _
  // Predicated region
  $region62: #{transformer_forward.1} parent=0 // pred_check
    _
  $region63: #{transformer_forward.1} parent=0 // pred_check_branch
    %55 = sbr.rel (0) target = $region65
  $region64: #{transformer_forward.1} parent=0 // pred_region
    _
  $region65: #{transformer_forward.1} parent=0 // pred_fallthru
    _
  // Predicated region
  $region66: #{transformer_forward.1} parent=0 // pred_check
    _
  $region67: #{transformer_forward.1} parent=0 // pred_check_branch
    %57 = sbr.rel (0) target = $region69
  $region68: #{transformer_forward.1} parent=0 // pred_region
    _
  $region69: #{transformer_forward.1} parent=0 // pred_fallthru
    _
  %v58 = vld [vmem:[%s0] sm:$0x3]
  %v59 = vld [vmem:[%s1] sm:$0xff]
  %v60 = vld [vmem:[%s1 + $0x8] sm:$0xff]
  %v61 = vld [vmem:[%s1 + $0x10] sm:$0xff]
  %v62 = vld [vmem:[%s1 + $0x18] sm:$0xff]
  %v63 = vld [vmem:[%s1 + $0x20] sm:$0xff]
  %v64 = vld [vmem:[%s1 + $0x28] sm:$0xff]
  %v65 = vld [vmem:[%s1 + $0x30] sm:$0xff]
  %v66 = vld [vmem:[%s1 + $0x38] sm:$0xff]
  %v67 = vld [vmem:[%s1 + $0x40] sm:$0xff]
  %v68 = vld [vmem:[%s1 + $0x48] sm:$0xff]
  %v69 = vld [vmem:[%s1 + $0x50] sm:$0xff]
  %v70 = vld [vmem:[%s1 + $0x58] sm:$0xff]
  %v71 = vld [vmem:[%s1 + $0x60] sm:$0xff]
  %v72 = vld [vmem:[%s1 + $0x68] sm:$0xff]
  %v73 = vld [vmem:[%s1 + $0x70] sm:$0xff]
  %v74 = vld [vmem:[%s1 + $0x78] sm:$0xff]
  %vm75 = vcmask 523264
  %v77 = vsel %vm75, %v58, 0
  %79 = vmatpush.msra.mxu0 0.0
  %80 = vmatpush.msra.mxu0 0.0
  %81 = vmatpush.msra.mxu0 0.0
  %82 = vmatpush.msra.mxu0 0.0
  %83 = vmatpush.msra.mxu0 0.0
  %84 = vmatpush.msra.mxu0 0.0
  %85 = vmatpush.msra.mxu0 0.0
  %86 = vmatpush.msra.mxu0 0.0
  %87 = vmatpush.msra.mxu0 %v73
  %88 = vmatpush.msra.mxu0 %v71
  %89 = vmatpush.msra.mxu0 %v69
  %90 = vmatpush.msra.mxu0 %v67
  %91 = vmatpush.msra.mxu0 %v65
  %92 = vmatpush.msra.mxu0 %v63
  %93 = vmatpush.msra.mxu0 %v61
  %94 = vmatpush.msra.mxu0 %v59
  %95 = vmatmul.f32.gmra.mxu0 %v77
  %v96 = vpop.f32.mrf.mxu0
  %v97 = vadd.f32 0.0, %v96
  %98 = vdwg.mxu0
  %99 = vmatpush.msra.mxu0 0.0
  %100 = vmatpush.msra.mxu0 0.0
  %101 = vmatpush.msra.mxu0 0.0
  %102 = vmatpush.msra.mxu0 0.0
  %103 = vmatpush.msra.mxu0 0.0
  %104 = vmatpush.msra.mxu0 0.0
  %105 = vmatpush.msra.mxu0 0.0
  %106 = vmatpush.msra.mxu0 0.0
  %107 = vmatpush.msra.mxu0 %v74
  %108 = vmatpush.msra.mxu0 %v72
  %109 = vmatpush.msra.mxu0 %v70
  %110 = vmatpush.msra.mxu0 %v68
  %111 = vmatpush.msra.mxu0 %v66
  %112 = vmatpush.msra.mxu0 %v64
  %113 = vmatpush.msra.mxu0 %v62
  %114 = vmatpush.msra.mxu0 %v60
  %115 = vmatmul.f32.gmra.mxu0 %v77
  %v116 = vpop.f32.mrf.mxu0
  %v117 = vadd.f32 0.0, %v116
  %118 = vdwg.mxu0
  %v119 = vld [vmem:[%s2] sm:$0x3]
  %v120 = vld [vmem:[%s3] sm:$0x3]
  %vm121 = vcmask 1041408
  %v122 = vsel %vm121, %v97, 0.0
  %v123 = vsel %vm121, %v117, 0.0
  %v124 = vadd.f32 %v122, %v123
  %125 = vadd.xlane.f32.xlu0 %v124
  %v126 = vpop.xlane.xlu0 %125
  %v127 = vrcp.pop 256.0
  %v128 = vmul.f32 256.0, %v127
  %v129 = vsub.f32 1.0, %v128
  %v130 = vmul.f32 %v127, %v129
  %v131 = vadd.f32 %v127, %v130
  %vm132 = vweird.f32 %v127
  %v133 = vsel %vm132, %v127, %v131
  %v134 = vmul.f32 %v126, %v133
  %v135 = vsub.f32 %v97, %v134
  %v136 = vsub.f32 %v117, %v134
  %v137 = vmul.f32 %v135, %v135
  %v138 = vmul.f32 %v136, %v136
  %v139 = vsel %vm121, %v137, 0.0
  %v140 = vsel %vm121, %v138, 0.0
  %v141 = vadd.f32 %v139, %v140
  %142 = vadd.xlane.f32.xlu0 %v141
  %v143 = vpop.xlane.xlu0 %142
  %v144 = vmul.f32 %v143, %v133
  %v145 = vadd.f32 %v144, 1e-05
  %v146 = vrsqrt.pop %v145
  %v147 = vmul.f32 %v146, %v145
  %v148 = vmul.f32 %v147, %v146
  %v149 = vmul.f32 0.5, %v148
  %v150 = vsub.f32 1.5, %v149
  %v151 = vmul.f32 %v146, %v150
  %vm152 = vweird.f32 %v145
  %vm153 = vweird.f32 %v146
  %vm154 = vmor %vm152, %vm153
  %v155 = vsel %vm154, %v146, %v151
  %v156 = vmul.f32 %v135, %v155
  %v157 = vmul.f32 %v136, %v155
  %v159 = vperm.slane %v119, 0
  %v160 = vperm.slane %v119, 1
  %v163 = vmul.f32 %v156, %v159
  %v164 = vmul.f32 %v157, %v160
  %v166 = vperm.slane %v120, 0
  %v167 = vperm.slane %v120, 1
  %v170 = vadd.f32 %v163, %v166
  %v171 = vadd.f32 %v164, %v167
  %v173 = vrot.slane %v170, 1
  %vm175 = vcmask 253952
  %176 = vst.msk [vmem:[#allocation2] sm:$0x1] %vm175, %v170
  %177 = vst.msk [vmem:[#allocation2 + $0x8] sm:$0x1] %vm175, %v173
  %v178 = vperm.slane %v170, 0
  %v179 = vperm.slane %v173, 0
  %180 = vrot.lane.b32.xlu0 %v178, 96
  %v181 = vpop.permute.xlu0 %180
  %182 = vrot.lane.b32.xlu0 %v179, 96
  %v183 = vpop.permute.xlu0 %182
  %186 = vst.msk [vmem:[#allocation2 + $0x1] sm:$0x1] %vm175, %v181
  %187 = vst.msk [vmem:[#allocation2 + $0x9] sm:$0x1] %vm175, %v183
  %188 = vrot.lane.b32.xlu0 %v178, 64
  %v189 = vpop.permute.xlu0 %188
  %190 = vrot.lane.b32.xlu0 %v179, 64
  %v191 = vpop.permute.xlu0 %190
  %194 = vst.msk [vmem:[#allocation2 + $0x2] sm:$0x1] %vm175, %v189
  %195 = vst.msk [vmem:[#allocation2 + $0xa] sm:$0x1] %vm175, %v191
  %196 = vrot.lane.b32.xlu0 %v178, 32
  %v197 = vpop.permute.xlu0 %196
  %198 = vrot.lane.b32.xlu0 %v179, 32
  %v199 = vpop.permute.xlu0 %198
  %202 = vst.msk [vmem:[#allocation2 + $0x3] sm:$0x1] %vm175, %v197
  %203 = vst.msk [vmem:[#allocation2 + $0xb] sm:$0x1] %vm175, %v199
  %v205 = vrot.slane %v171, 1
  %207 = vst.msk [vmem:[#allocation2 + $0x4] sm:$0x1] %vm175, %v171
  %208 = vst.msk [vmem:[#allocation2 + $0xc] sm:$0x1] %vm175, %v205
  %v209 = vperm.slane %v171, 0
  %v210 = vperm.slane %v205, 0
  %211 = vrot.lane.b32.xlu0 %v209, 96
  %v212 = vpop.permute.xlu0 %211
  %213 = vrot.lane.b32.xlu0 %v210, 96
  %v214 = vpop.permute.xlu0 %213
  %217 = vst.msk [vmem:[#allocation2 + $0x5] sm:$0x1] %vm175, %v212
  %218 = vst.msk [vmem:[#allocation2 + $0xd] sm:$0x1] %vm175, %v214
  %219 = vrot.lane.b32.xlu0 %v209, 64
  %v220 = vpop.permute.xlu0 %219
  %221 = vrot.lane.b32.xlu0 %v210, 64
  %v222 = vpop.permute.xlu0 %221
  %225 = vst.msk [vmem:[#allocation2 + $0x6] sm:$0x1] %vm175, %v220
  %226 = vst.msk [vmem:[#allocation2 + $0xe] sm:$0x1] %vm175, %v222
  %227 = vrot.lane.b32.xlu0 %v209, 32
  %v228 = vpop.permute.xlu0 %227
  %229 = vrot.lane.b32.xlu0 %v210, 32
  %v230 = vpop.permute.xlu0 %229
  %233 = vst.msk [vmem:[#allocation2 + $0x7] sm:$0x1] %vm175, %v228
  %234 = vst.msk [vmem:[#allocation2 + $0xf] sm:$0x1] %vm175, %v230
  %v235 = vld [vmem:[#allocation2] sm:$0xff]
  %v236 = vld [vmem:[#allocation2 + $0x8] sm:$0xff]
  %v237 = vld [vmem:[%s4] sm:$0xff]
  %v238 = vld [vmem:[%s4 + $0x8] sm:$0xff]
  %v239 = vld [vmem:[%s4 + $0x10] sm:$0xff]
  %v240 = vld [vmem:[%s4 + $0x18] sm:$0xff]
  %v241 = vld [vmem:[%s4 + $0x20] sm:$0xff]
  %v242 = vld [vmem:[%s4 + $0x28] sm:$0xff]
  %v243 = vld [vmem:[%s5] sm:$0xff]
  %v244 = vld [vmem:[%s5 + $0x8] sm:$0xff]
  %v245 = vld [vmem:[%s6] sm:$0xff]
  %v246 = vld [vmem:[%s6 + $0x8] sm:$0xff]
  %v247 = vld [vmem:[%s7] sm:$0x3]
  %v248 = vld [vmem:[%s7 + $0x2] sm:$0x3]
  %v249 = vld [vmem:[%s8] sm:$0xff]
  %v250 = vld [vmem:[%s8 + $0x8] sm:$0xff]
  %vm251 = vcmask 64512
  %v253 = vsel %vm251, %v237, 0
  %v256 = vsel %vm251, %v238, 0
  %v259 = vsel %vm251, %v239, 0
  %261 = vmatpush.msra.mxu0 0.0
  %262 = vmatpush.msra.mxu0 0.0
  %263 = vmatpush.msra.mxu0 0.0
  %264 = vmatpush.msra.mxu0 0.0
  %265 = vmatpush.msra.mxu0 0.0
  %266 = vmatpush.msra.mxu0 0.0
  %267 = vmatpush.msra.mxu0 0.0
  %268 = vmatpush.msra.mxu0 0.0
  %269 = vmatpush.msra.mxu0 0.0
  %270 = vmatpush.msra.mxu0 0.0
  %271 = vmatpush.msra.mxu0 0.0
  %272 = vmatpush.msra.mxu0 0.0
  %273 = vmatpush.msra.mxu0 0.0
  %274 = vmatpush.msra.mxu0 0.0
  %275 = vmatpush.msra.mxu0 0.0
  %276 = vmatpush.msra.mxu0 %v235
  %277 = vmatmul.f32.gmra.mxu0 %v253
  %v278 = vpop.f32.mrf.mxu0
  %v279 = vadd.f32 0.0, %v278
  %280 = vmatmul.f32.gmra.mxu0 %v256
  %v281 = vpop.f32.mrf.mxu0
  %v282 = vadd.f32 0.0, %v281
  %283 = vmatmul.f32.gmra.mxu0 %v259
  %v284 = vpop.f32.mrf.mxu0
  %v285 = vadd.f32 0.0, %v284
  %286 = vdwg.mxu0
  %vm287 = vcmask 261120
  %v289 = vsel %vm287, %v279, 0
  %v292 = vsel %vm287, %v282, 0
  %294 = vmatpush.xpose.msra.mxu0 0.0
  %295 = vmatpush.xpose.msra.mxu0 0.0
  %296 = vmatpush.xpose.msra.mxu0 0.0
  %297 = vmatpush.xpose.msra.mxu0 0.0
  %298 = vmatpush.xpose.msra.mxu0 0.0
  %299 = vmatpush.xpose.msra.mxu0 0.0
  %300 = vmatpush.xpose.msra.mxu0 0.0
  %301 = vmatpush.xpose.msra.mxu0 0.0
  %302 = vmatpush.xpose.msra.mxu0 0.0
  %303 = vmatpush.xpose.msra.mxu0 0.0
  %304 = vmatpush.xpose.msra.mxu0 0.0
  %305 = vmatpush.xpose.msra.mxu0 0.0
  %306 = vmatpush.xpose.msra.mxu0 0.0
  %307 = vmatpush.xpose.msra.mxu0 0.0
  %308 = vmatpush.xpose.msra.mxu0 0.0
  %309 = vmatpush.xpose.msra.mxu0 %v292
  %310 = vmatmul.f32.gmra.mxu0 %v289
  %v311 = vpop.f32.mrf.mxu0
  %v312 = vadd.f32 0.0, %v311
  %313 = vdwg.mxu0
  %v314 = vmul.f32 %v312, 0.17677669
  %v315 = vsel %vm251, %v314, -inf
  %316 = vmax.xlane.f32.xlu0 %v315
  %v317 = vpop.xlane.xlu0 %316
  %v318 = vsub.f32 %v314, %v317
  %v319 = vmul.f32 %v318, 1.442695
  %v320 = vpow.pop %v319
  %v321 = vsel %vm251, %v320, 0.0
  %322 = vadd.xlane.f32.xlu0 %v321
  %v323 = vpop.xlane.xlu0 %322
  %v324 = vrcp.pop %v323
  %v325 = vmul.f32 %v323, %v324
  %v326 = vsub.f32 1.0, %v325
  %v327 = vmul.f32 %v324, %v326
  %v328 = vadd.f32 %v324, %v327
  %vm329 = vweird.f32 %v323
  %vm330 = vweird.f32 %v324
  %vm331 = vmor %vm329, %vm330
  %v332 = vsel %vm331, %v324, %v328
  %v333 = vand.u32 2147483647, %v323
  %vm334 = vcmp.eq.f32.partialorder %v333, 8.507059e+37
  %v335 = vand.u32 %v323, 2147483648
  %v336 = vor.u32 1.1754944e-38, %v335
  %v337 = vsel %vm334, %v336, %v332
  %v338 = vmul.f32 %v320, %v337
  %v340 = vsel %vm251, %v338, 0
  %342 = vmatpush.msra.mxu0 0.0
  %343 = vmatpush.msra.mxu0 0.0
  %344 = vmatpush.msra.mxu0 0.0
  %345 = vmatpush.msra.mxu0 0.0
  %346 = vmatpush.msra.mxu0 0.0
  %347 = vmatpush.msra.mxu0 0.0
  %348 = vmatpush.msra.mxu0 0.0
  %349 = vmatpush.msra.mxu0 0.0
  %350 = vmatpush.msra.mxu0 0.0
  %351 = vmatpush.msra.mxu0 0.0
  %352 = vmatpush.msra.mxu0 0.0
  %353 = vmatpush.msra.mxu0 0.0
  %354 = vmatpush.msra.mxu0 0.0
  %355 = vmatpush.msra.mxu0 0.0
  %356 = vmatpush.msra.mxu0 0.0
  %357 = vmatpush.msra.mxu0 %v285
  %358 = vmatmul.f32.gmra.mxu0 %v340
  %v359 = vpop.f32.mrf.mxu0
  %v360 = vadd.f32 0.0, %v359
  %361 = vdwg.mxu0
  %v362 = vsel %vm287, %v360, 0.0
  %v363 = vrot.slane %v362, 4
  %v364 = vadd.f32 %v362, %v363
  %v365 = vrot.slane %v364, 2
  %v366 = vadd.f32 %v364, %v365
  %v367 = vrot.slane %v366, 1
  %v368 = vadd.f32 %v366, %v367
  %v369 = vrcp.pop 8.0
  %v370 = vmul.f32 8.0, %v369
  %v371 = vsub.f32 1.0, %v370
  %v372 = vmul.f32 %v369, %v371
  %v373 = vadd.f32 %v369, %v372
  %vm374 = vweird.f32 %v369
  %v375 = vsel %vm374, %v369, %v373
  %v376 = vmul.f32 %v368, %v375
  %v377 = vsub.f32 %v360, %v376
  %v378 = vmul.f32 %v377, %v377
  %v379 = vsel %vm287, %v378, 0.0
  %v380 = vrot.slane %v379, 4
  %v381 = vadd.f32 %v379, %v380
  %v382 = vrot.slane %v381, 2
  %v383 = vadd.f32 %v381, %v382
  %v384 = vrot.slane %v383, 1
  %v385 = vadd.f32 %v383, %v384
  %v386 = vmul.f32 %v385, %v375
  %v387 = vadd.f32 %v386, 1e-05
  %v388 = vrsqrt.pop %v387
  %v389 = vmul.f32 %v388, %v387
  %v390 = vmul.f32 %v389, %v388
  %v391 = vmul.f32 0.5, %v390
  %v392 = vsub.f32 1.5, %v391
  %v393 = vmul.f32 %v388, %v392
  %vm394 = vweird.f32 %v387
  %vm395 = vweird.f32 %v388
  %vm396 = vmor %vm394, %vm395
  %v397 = vsel %vm396, %v388, %v393
  %v398 = vmul.f32 %v377, %v397
  %400 = vset.pattern.permute.xlu0 0
  %401 = vperm.xlu0 %400, %v243
  %v402 = vpop.permute.xlu0 %401
  %v404 = vmul.f32 %v398, %v402
  %406 = vset.pattern.permute.xlu0 0
  %407 = vperm.xlu0 %406, %v245
  %v408 = vpop.permute.xlu0 %407
  %v410 = vadd.f32 %v404, %v408
  %v412 = vsel %vm251, %v247, 0
  %414 = vmatpush.msra.mxu0 0.0
  %415 = vmatpush.msra.mxu0 0.0
  %416 = vmatpush.msra.mxu0 0.0
  %417 = vmatpush.msra.mxu0 0.0
  %418 = vmatpush.msra.mxu0 0.0
  %419 = vmatpush.msra.mxu0 0.0
  %420 = vmatpush.msra.mxu0 0.0
  %421 = vmatpush.msra.mxu0 0.0
  %422 = vmatpush.msra.mxu0 0.0
  %423 = vmatpush.msra.mxu0 0.0
  %424 = vmatpush.msra.mxu0 0.0
  %425 = vmatpush.msra.mxu0 0.0
  %426 = vmatpush.msra.mxu0 0.0
  %427 = vmatpush.msra.mxu0 0.0
  %428 = vmatpush.msra.mxu0 0.0
  %429 = vmatpush.msra.mxu0 %v410
  %430 = vmatmul.f32.gmra.mxu0 %v412
  %v431 = vpop.f32.mrf.mxu0
  %v432 = vadd.f32 0.0, %v431
  %433 = vdwg.mxu0
  %v434 = vmul.f32 %v432, 0.5
  %v435 = vmul.f32 %v432, 0.70710677
  %v436 = vmul.f32 %v435, %v435
  %v437 = vmin.f32 16.0, %v436
  %v438 = vmul.f32 %v437, 2.1237322e-06
  %v439 = vadd.f32 %v438, 0.00028619796
  %v440 = vmul.f32 %v437, %v439
  %v441 = vadd.f32 %v440, 0.0036580483
  %v442 = vmul.f32 %v437, %v441
  %v443 = vadd.f32 %v442, 0.05243302
  %v444 = vmul.f32 %v437, %v443
  %v445 = vadd.f32 %v444, 0.18741608
  %v446 = vmul.f32 %v437, %v445
  %v447 = vadd.f32 %v446, 1.1283791
  %v448 = vmul.f32 %v435, %v447
  %v449 = vmul.f32 %v437, 3.8918573e-05
  %v450 = vadd.f32 %v449, 0.001143296
  %v451 = vmul.f32 %v437, %v450
  %v452 = vadd.f32 %v451, 0.014752088
  %v453 = vmul.f32 %v437, %v452
  %v454 = vadd.f32 %v453, 0.112945676
  %v455 = vmul.f32 %v437, %v454
  %v456 = vadd.f32 %v455, 0.4994258
  %v457 = vmul.f32 %v437, %v456
  %v458 = vadd.f32 %v457, 1.0
  %v459 = vrcp.pop %v458
  %v460 = vmul.f32 %v458, %v459
  %v461 = vsub.f32 1.0, %v460
  %v462 = vmul.f32 %v459, %v461
  %v463 = vadd.f32 %v459, %v462
  %vm464 = vweird.f32 %v458
  %vm465 = vweird.f32 %v459
  %vm466 = vmor %vm464, %vm465
  %v467 = vsel %vm466, %v459, %v463
  %v468 = vand.u32 2147483647, %v458
  %vm469 = vcmp.eq.f32.partialorder %v468, 8.507059e+37
  %v470 = vand.u32 %v458, 2147483648
  %v471 = vor.u32 1.1754944e-38, %v470
  %v472 = vsel %vm469, %v471, %v467
  %v473 = vmul.f32 %v448, %v472
  %v474 = vmin.f32 %v473, 1.0
  %v475 = vmax.f32 %v474, -1.0
  %v476 = vadd.f32 %v475, 1.0
  %v477 = vmul.f32 %v434, %v476
  %v478 = vperm.slane %v477, 0
  %480 = vset.pattern.permute.xlu0 0
  %481 = vperm.xlu0 %480, %v249
  %v482 = vpop.permute.xlu0 %481
  %v484 = vmul.f32 %v478, %v482
  %v485 = vperm.slane %v477, 1
  %486 = vset.pattern.permute.xlu0 1
  %487 = vperm.xlu0 %486, %v249
  %v488 = vpop.permute.xlu0 %487
  %v490 = vmul.f32 %v485, %v488
  %v491 = vadd.f32 %v484, %v490
  %v492 = vadd.f32 %v360, %v491
  %v494 = vsel %vm251, %v240, 0
  %v497 = vsel %vm251, %v241, 0
  %v500 = vsel %vm251, %v242, 0
  %502 = vmatpush.msra.mxu0 0.0
  %503 = vmatpush.msra.mxu0 0.0
  %504 = vmatpush.msra.mxu0 0.0
  %505 = vmatpush.msra.mxu0 0.0
  %506 = vmatpush.msra.mxu0 0.0
  %507 = vmatpush.msra.mxu0 0.0
  %508 = vmatpush.msra.mxu0 0.0
  %509 = vmatpush.msra.mxu0 0.0
  %510 = vmatpush.msra.mxu0 0.0
  %511 = vmatpush.msra.mxu0 0.0
  %512 = vmatpush.msra.mxu0 0.0
  %513 = vmatpush.msra.mxu0 0.0
  %514 = vmatpush.msra.mxu0 0.0
  %515 = vmatpush.msra.mxu0 0.0
  %516 = vmatpush.msra.mxu0 0.0
  %517 = vmatpush.msra.mxu0 %v492
  %518 = vmatmul.f32.gmra.mxu0 %v494
  %v519 = vpop.f32.mrf.mxu0
  %v520 = vadd.f32 0.0, %v519
  %521 = vmatmul.f32.gmra.mxu0 %v497
  %v522 = vpop.f32.mrf.mxu0
  %v523 = vadd.f32 0.0, %v522
  %524 = vmatmul.f32.gmra.mxu0 %v500
  %v525 = vpop.f32.mrf.mxu0
  %v526 = vadd.f32 0.0, %v525
  %527 = vdwg.mxu0
  %v529 = vsel %vm287, %v520, 0
  %v532 = vsel %vm287, %v523, 0
  %534 = vmatpush.xpose.msra.mxu0 0.0
  %535 = vmatpush.xpose.msra.mxu0 0.0
  %536 = vmatpush.xpose.msra.mxu0 0.0
  %537 = vmatpush.xpose.msra.mxu0 0.0
  %538 = vmatpush.xpose.msra.mxu0 0.0
  %539 = vmatpush.xpose.msra.mxu0 0.0
  %540 = vmatpush.xpose.msra.mxu0 0.0
  %541 = vmatpush.xpose.msra.mxu0 0.0
  %542 = vmatpush.xpose.msra.mxu0 0.0
  %543 = vmatpush.xpose.msra.mxu0 0.0
  %544 = vmatpush.xpose.msra.mxu0 0.0
  %545 = vmatpush.xpose.msra.mxu0 0.0
  %546 = vmatpush.xpose.msra.mxu0 0.0
  %547 = vmatpush.xpose.msra.mxu0 0.0
  %548 = vmatpush.xpose.msra.mxu0 0.0
  %549 = vmatpush.xpose.msra.mxu0 %v532
  %550 = vmatmul.f32.gmra.mxu0 %v529
  %v551 = vpop.f32.mrf.mxu0
  %v552 = vadd.f32 0.0, %v551
  %553 = vdwg.mxu0
  %v554 = vmul.f32 %v552, 0.17677669
  %v555 = vsel %vm251, %v554, -inf
  %556 = vmax.xlane.f32.xlu0 %v555
  %v557 = vpop.xlane.xlu0 %556
  %v558 = vsub.f32 %v554, %v557
  %v559 = vmul.f32 %v558, 1.442695
  %v560 = vpow.pop %v559
  %v561 = vsel %vm251, %v560, 0.0
  %562 = vadd.xlane.f32.xlu0 %v561
  %v563 = vpop.xlane.xlu0 %562
  %v564 = vrcp.pop %v563
  %v565 = vmul.f32 %v563, %v564
  %v566 = vsub.f32 1.0, %v565
  %v567 = vmul.f32 %v564, %v566
  %v568 = vadd.f32 %v564, %v567
  %vm569 = vweird.f32 %v563
  %vm570 = vweird.f32 %v564
  %vm571 = vmor %vm569, %vm570
  %v572 = vsel %vm571, %v564, %v568
  %v573 = vand.u32 2147483647, %v563
  %vm574 = vcmp.eq.f32.partialorder %v573, 8.507059e+37
  %v575 = vand.u32 %v563, 2147483648
  %v576 = vor.u32 1.1754944e-38, %v575
  %v577 = vsel %vm574, %v576, %v572
  %v578 = vmul.f32 %v560, %v577
  %v580 = vsel %vm251, %v578, 0
  %582 = vmatpush.msra.mxu0 0.0
  %583 = vmatpush.msra.mxu0 0.0
  %584 = vmatpush.msra.mxu0 0.0
  %585 = vmatpush.msra.mxu0 0.0
  %586 = vmatpush.msra.mxu0 0.0
  %587 = vmatpush.msra.mxu0 0.0
  %588 = vmatpush.msra.mxu0 0.0
  %589 = vmatpush.msra.mxu0 0.0
  %590 = vmatpush.msra.mxu0 0.0
  %591 = vmatpush.msra.mxu0 0.0
  %592 = vmatpush.msra.mxu0 0.0
  %593 = vmatpush.msra.mxu0 0.0
  %594 = vmatpush.msra.mxu0 0.0
  %595 = vmatpush.msra.mxu0 0.0
  %596 = vmatpush.msra.mxu0 0.0
  %597 = vmatpush.msra.mxu0 %v526
  %598 = vmatmul.f32.gmra.mxu0 %v580
  %v599 = vpop.f32.mrf.mxu0
  %v600 = vadd.f32 0.0, %v599
  %601 = vdwg.mxu0
  %v602 = vsel %vm287, %v600, 0.0
  %v603 = vrot.slane %v602, 4
  %v604 = vadd.f32 %v602, %v603
  %v605 = vrot.slane %v604, 2
  %v606 = vadd.f32 %v604, %v605
  %v607 = vrot.slane %v606, 1
  %v608 = vadd.f32 %v606, %v607
  %v609 = vmul.f32 %v608, %v375
  %v610 = vsub.f32 %v600, %v609
  %v611 = vmul.f32 %v610, %v610
  %v612 = vsel %vm287, %v611, 0.0
  %v613 = vrot.slane %v612, 4
  %v614 = vadd.f32 %v612, %v613
  %v615 = vrot.slane %v614, 2
  %v616 = vadd.f32 %v614, %v615
  %v617 = vrot.slane %v616, 1
  %v618 = vadd.f32 %v616, %v617
  %v619 = vmul.f32 %v618, %v375
  %v620 = vadd.f32 %v619, 1e-05
  %v621 = vrsqrt.pop %v620
  %v622 = vmul.f32 %v621, %v620
  %v623 = vmul.f32 %v622, %v621
  %v624 = vmul.f32 0.5, %v623
  %v625 = vsub.f32 1.5, %v624
  %v626 = vmul.f32 %v621, %v625
  %vm627 = vweird.f32 %v620
  %vm628 = vweird.f32 %v621
  %vm629 = vmor %vm627, %vm628
  %v630 = vsel %vm629, %v621, %v626
  %v631 = vmul.f32 %v610, %v630
  %633 = vset.pattern.permute.xlu0 0
  %634 = vperm.xlu0 %633, %v244
  %v635 = vpop.permute.xlu0 %634
  %v637 = vmul.f32 %v631, %v635
  %639 = vset.pattern.permute.xlu0 0
  %640 = vperm.xlu0 %639, %v246
  %v641 = vpop.permute.xlu0 %640
  %v643 = vadd.f32 %v637, %v641
  %v645 = vsel %vm251, %v248, 0
  %647 = vmatpush.msra.mxu0 0.0
  %648 = vmatpush.msra.mxu0 0.0
  %649 = vmatpush.msra.mxu0 0.0
  %650 = vmatpush.msra.mxu0 0.0
  %651 = vmatpush.msra.mxu0 0.0
  %652 = vmatpush.msra.mxu0 0.0
  %653 = vmatpush.msra.mxu0 0.0
  %654 = vmatpush.msra.mxu0 0.0
  %655 = vmatpush.msra.mxu0 0.0
  %656 = vmatpush.msra.mxu0 0.0
  %657 = vmatpush.msra.mxu0 0.0
  %658 = vmatpush.msra.mxu0 0.0
  %659 = vmatpush.msra.mxu0 0.0
  %660 = vmatpush.msra.mxu0 0.0
  %661 = vmatpush.msra.mxu0 0.0
  %662 = vmatpush.msra.mxu0 %v643
  %663 = vmatmul.f32.gmra.mxu0 %v645
  %v664 = vpop.f32.mrf.mxu0
  %v665 = vadd.f32 0.0, %v664
  %666 = vdwg.mxu0
  %v667 = vmul.f32 %v665, 0.5
  %v668 = vmul.f32 %v665, 0.70710677
  %v669 = vmul.f32 %v668, %v668
  %v670 = vmin.f32 16.0, %v669
  %v671 = vmul.f32 %v670, 2.1237322e-06
  %v672 = vadd.f32 %v671, 0.00028619796
  %v673 = vmul.f32 %v670, %v672
  %v674 = vadd.f32 %v673, 0.0036580483
  %v675 = vmul.f32 %v670, %v674
  %v676 = vadd.f32 %v675, 0.05243302
  %v677 = vmul.f32 %v670, %v676
  %v678 = vadd.f32 %v677, 0.18741608
  %v679 = vmul.f32 %v670, %v678
  %v680 = vadd.f32 %v679, 1.1283791
  %v681 = vmul.f32 %v668, %v680
  %v682 = vmul.f32 %v670, 3.8918573e-05
  %v683 = vadd.f32 %v682, 0.001143296
  %v684 = vmul.f32 %v670, %v683
  %v685 = vadd.f32 %v684, 0.014752088
  %v686 = vmul.f32 %v670, %v685
  %v687 = vadd.f32 %v686, 0.112945676
  %v688 = vmul.f32 %v670, %v687
  %v689 = vadd.f32 %v688, 0.4994258
  %v690 = vmul.f32 %v670, %v689
  %v691 = vadd.f32 %v690, 1.0
  %v692 = vrcp.pop %v691
  %v693 = vmul.f32 %v691, %v692
  %v694 = vsub.f32 1.0, %v693
  %v695 = vmul.f32 %v692, %v694
  %v696 = vadd.f32 %v692, %v695
  %vm697 = vweird.f32 %v691
  %vm698 = vweird.f32 %v692
  %vm699 = vmor %vm697, %vm698
  %v700 = vsel %vm699, %v692, %v696
  %v701 = vand.u32 2147483647, %v691
  %vm702 = vcmp.eq.f32.partialorder %v701, 8.507059e+37
  %v703 = vand.u32 %v691, 2147483648
  %v704 = vor.u32 1.1754944e-38, %v703
  %v705 = vsel %vm702, %v704, %v700
  %v706 = vmul.f32 %v681, %v705
  %v707 = vmin.f32 %v706, 1.0
  %v708 = vmax.f32 %v707, -1.0
  %v709 = vadd.f32 %v708, 1.0
  %v710 = vmul.f32 %v667, %v709
  %v711 = vperm.slane %v710, 0
  %713 = vset.pattern.permute.xlu0 0
  %714 = vperm.xlu0 %713, %v250
  %v715 = vpop.permute.xlu0 %714
  %v717 = vmul.f32 %v711, %v715
  %v718 = vperm.slane %v710, 1
  %719 = vset.pattern.permute.xlu0 1
  %720 = vperm.xlu0 %719, %v250
  %v721 = vpop.permute.xlu0 %720
  %v723 = vmul.f32 %v718, %v721
  %v724 = vadd.f32 %v717, %v723
  %v725 = vadd.f32 %v600, %v724
  %v726 = vsel %vm287, %v725, 0.0
  %v727 = vrot.slane %v726, 4
  %v728 = vadd.f32 %v726, %v727
  %v729 = vrot.slane %v728, 2
  %v730 = vadd.f32 %v728, %v729
  %v731 = vrot.slane %v730, 1
  %v732 = vadd.f32 %v730, %v731
  %v733 = vmul.f32 %v732, %v375
  %734 = vst.msk [vmem:[#allocation3] sm:$0x1] %vm175, %v733
  %735 = vmatpush.msra.mxu0 0.0
  %736 = vmatpush.msra.mxu0 0.0
  %737 = vmatpush.msra.mxu0 0.0
  %738 = vmatpush.msra.mxu0 0.0
  %739 = vmatpush.msra.mxu0 0.0
  %740 = vmatpush.msra.mxu0 0.0
  %741 = vmatpush.msra.mxu0 0.0
  %742 = vmatpush.msra.mxu0 0.0
  %743 = vmatpush.msra.mxu0 0.0
  %744 = vmatpush.msra.mxu0 0.0
  %745 = vmatpush.msra.mxu0 0.0
  %746 = vmatpush.msra.mxu0 0.0
  %747 = vmatpush.msra.mxu0 0.0
  %748 = vmatpush.msra.mxu0 0.0
  %749 = vmatpush.msra.mxu0 0.0
  %750 = vmatpush.msra.mxu0 %v236
  %751 = vmatmul.f32.gmra.mxu0 %v253
  %v752 = vpop.f32.mrf.mxu0
  %v753 = vadd.f32 0.0, %v752
  %754 = vmatmul.f32.gmra.mxu0 %v256
  %v755 = vpop.f32.mrf.mxu0
  %v756 = vadd.f32 0.0, %v755
  %757 = vmatmul.f32.gmra.mxu0 %v259
  %v758 = vpop.f32.mrf.mxu0
  %v759 = vadd.f32 0.0, %v758
  %760 = vdwg.mxu0
  %v762 = vsel %vm287, %v753, 0
  %v765 = vsel %vm287, %v756, 0
  %767 = vmatpush.xpose.msra.mxu0 0.0
  %768 = vmatpush.xpose.msra.mxu0 0.0
  %769 = vmatpush.xpose.msra.mxu0 0.0
  %770 = vmatpush.xpose.msra.mxu0 0.0
  %771 = vmatpush.xpose.msra.mxu0 0.0
  %772 = vmatpush.xpose.msra.mxu0 0.0
  %773 = vmatpush.xpose.msra.mxu0 0.0
  %774 = vmatpush.xpose.msra.mxu0 0.0
  %775 = vmatpush.xpose.msra.mxu0 0.0
  %776 = vmatpush.xpose.msra.mxu0 0.0
  %777 = vmatpush.xpose.msra.mxu0 0.0
  %778 = vmatpush.xpose.msra.mxu0 0.0
  %779 = vmatpush.xpose.msra.mxu0 0.0
  %780 = vmatpush.xpose.msra.mxu0 0.0
  %781 = vmatpush.xpose.msra.mxu0 0.0
  %782 = vmatpush.xpose.msra.mxu0 %v765
  %783 = vmatmul.f32.gmra.mxu0 %v762
  %v784 = vpop.f32.mrf.mxu0
  %v785 = vadd.f32 0.0, %v784
  %786 = vdwg.mxu0
  %v787 = vmul.f32 %v785, 0.17677669
  %v788 = vsel %vm251, %v787, -inf
  %789 = vmax.xlane.f32.xlu0 %v788
  %v790 = vpop.xlane.xlu0 %789
  %v791 = vsub.f32 %v787, %v790
  %v792 = vmul.f32 %v791, 1.442695
  %v793 = vpow.pop %v792
  %v794 = vsel %vm251, %v793, 0.0
  %795 = vadd.xlane.f32.xlu0 %v794
  %v796 = vpop.xlane.xlu0 %795
  %v797 = vrcp.pop %v796
  %v798 = vmul.f32 %v796, %v797
  %v799 = vsub.f32 1.0, %v798
  %v800 = vmul.f32 %v797, %v799
  %v801 = vadd.f32 %v797, %v800
  %vm802 = vweird.f32 %v796
  %vm803 = vweird.f32 %v797
  %vm804 = vmor %vm802, %vm803
  %v805 = vsel %vm804, %v797, %v801
  %v806 = vand.u32 2147483647, %v796
  %vm807 = vcmp.eq.f32.partialorder %v806, 8.507059e+37
  %v808 = vand.u32 %v796, 2147483648
  %v809 = vor.u32 1.1754944e-38, %v808
  %v810 = vsel %vm807, %v809, %v805
  %v811 = vmul.f32 %v793, %v810
  %v813 = vsel %vm251, %v811, 0
  %815 = vmatpush.msra.mxu0 0.0
  %816 = vmatpush.msra.mxu0 0.0
  %817 = vmatpush.msra.mxu0 0.0
  %818 = vmatpush.msra.mxu0 0.0
  %819 = vmatpush.msra.mxu0 0.0
  %820 = vmatpush.msra.mxu0 0.0
  %821 = vmatpush.msra.mxu0 0.0
  %822 = vmatpush.msra.mxu0 0.0
  %823 = vmatpush.msra.mxu0 0.0
  %824 = vmatpush.msra.mxu0 0.0
  %825 = vmatpush.msra.mxu0 0.0
  %826 = vmatpush.msra.mxu0 0.0
  %827 = vmatpush.msra.mxu0 0.0
  %828 = vmatpush.msra.mxu0 0.0
  %829 = vmatpush.msra.mxu0 0.0
  %830 = vmatpush.msra.mxu0 %v759
  %831 = vmatmul.f32.gmra.mxu0 %v813
  %v832 = vpop.f32.mrf.mxu0
  %v833 = vadd.f32 0.0, %v832
  %834 = vdwg.mxu0
  %v835 = vsel %vm287, %v833, 0.0
  %v836 = vrot.slane %v835, 4
  %v837 = vadd.f32 %v835, %v836
  %v838 = vrot.slane %v837, 2
  %v839 = vadd.f32 %v837, %v838
  %v840 = vrot.slane %v839, 1
  %v841 = vadd.f32 %v839, %v840
  %v842 = vmul.f32 %v841, %v375
  %v843 = vsub.f32 %v833, %v842
  %v844 = vmul.f32 %v843, %v843
  %v845 = vsel %vm287, %v844, 0.0
  %v846 = vrot.slane %v845, 4
  %v847 = vadd.f32 %v845, %v846
  %v848 = vrot.slane %v847, 2
  %v849 = vadd.f32 %v847, %v848
  %v850 = vrot.slane %v849, 1
  %v851 = vadd.f32 %v849, %v850
  %v852 = vmul.f32 %v851, %v375
  %v853 = vadd.f32 %v852, 1e-05
  %v854 = vrsqrt.pop %v853
  %v855 = vmul.f32 %v854, %v853
  %v856 = vmul.f32 %v855, %v854
  %v857 = vmul.f32 0.5, %v856
  %v858 = vsub.f32 1.5, %v857
  %v859 = vmul.f32 %v854, %v858
  %vm860 = vweird.f32 %v853
  %vm861 = vweird.f32 %v854
  %vm862 = vmor %vm860, %vm861
  %v863 = vsel %vm862, %v854, %v859
  %v864 = vmul.f32 %v843, %v863
  %v865 = vmul.f32 %v864, %v402
  %v866 = vadd.f32 %v865, %v408
  %867 = vmatpush.msra.mxu0 0.0
  %868 = vmatpush.msra.mxu0 0.0
  %869 = vmatpush.msra.mxu0 0.0
  %870 = vmatpush.msra.mxu0 0.0
  %871 = vmatpush.msra.mxu0 0.0
  %872 = vmatpush.msra.mxu0 0.0
  %873 = vmatpush.msra.mxu0 0.0
  %874 = vmatpush.msra.mxu0 0.0
  %875 = vmatpush.msra.mxu0 0.0
  %876 = vmatpush.msra.mxu0 0.0
  %877 = vmatpush.msra.mxu0 0.0
  %878 = vmatpush.msra.mxu0 0.0
  %879 = vmatpush.msra.mxu0 0.0
  %880 = vmatpush.msra.mxu0 0.0
  %881 = vmatpush.msra.mxu0 0.0
  %882 = vmatpush.msra.mxu0 %v866
  %883 = vmatmul.f32.gmra.mxu0 %v412
  %v884 = vpop.f32.mrf.mxu0
  %v885 = vadd.f32 0.0, %v884
  %886 = vdwg.mxu0
  %v887 = vmul.f32 %v885, 0.5
  %v888 = vmul.f32 %v885, 0.70710677
  %v889 = vmul.f32 %v888, %v888
  %v890 = vmin.f32 16.0, %v889
  %v891 = vmul.f32 %v890, 2.1237322e-06
  %v892 = vadd.f32 %v891, 0.00028619796
  %v893 = vmul.f32 %v890, %v892
  %v894 = vadd.f32 %v893, 0.0036580483
  %v895 = vmul.f32 %v890, %v894
  %v896 = vadd.f32 %v895, 0.05243302
  %v897 = vmul.f32 %v890, %v896
  %v898 = vadd.f32 %v897, 0.18741608
  %v899 = vmul.f32 %v890, %v898
  %v900 = vadd.f32 %v899, 1.1283791
  %v901 = vmul.f32 %v888, %v900
  %v902 = vmul.f32 %v890, 3.8918573e-05
  %v903 = vadd.f32 %v902, 0.001143296
  %v904 = vmul.f32 %v890, %v903
  %v905 = vadd.f32 %v904, 0.014752088
  %v906 = vmul.f32 %v890, %v905
  %v907 = vadd.f32 %v906, 0.112945676
  %v908 = vmul.f32 %v890, %v907
  %v909 = vadd.f32 %v908, 0.4994258
  %v910 = vmul.f32 %v890, %v909
  %v911 = vadd.f32 %v910, 1.0
  %v912 = vrcp.pop %v911
  %v913 = vmul.f32 %v911, %v912
  %v914 = vsub.f32 1.0, %v913
  %v915 = vmul.f32 %v912, %v914
  %v916 = vadd.f32 %v912, %v915
  %vm917 = vweird.f32 %v911
  %vm918 = vweird.f32 %v912
  %vm919 = vmor %vm917, %vm918
  %v920 = vsel %vm919, %v912, %v916
  %v921 = vand.u32 2147483647, %v911
  %vm922 = vcmp.eq.f32.partialorder %v921, 8.507059e+37
  %v923 = vand.u32 %v911, 2147483648
  %v924 = vor.u32 1.1754944e-38, %v923
  %v925 = vsel %vm922, %v924, %v920
  %v926 = vmul.f32 %v901, %v925
  %v927 = vmin.f32 %v926, 1.0
  %v928 = vmax.f32 %v927, -1.0
  %v929 = vadd.f32 %v928, 1.0
  %v930 = vmul.f32 %v887, %v929
  %v931 = vperm.slane %v930, 0
  %v932 = vmul.f32 %v931, %v482
  %v933 = vperm.slane %v930, 1
  %v934 = vmul.f32 %v933, %v488
  %v935 = vadd.f32 %v932, %v934
  %v936 = vadd.f32 %v833, %v935
  %937 = vmatpush.msra.mxu0 0.0
  %938 = vmatpush.msra.mxu0 0.0
  %939 = vmatpush.msra.mxu0 0.0
  %940 = vmatpush.msra.mxu0 0.0
  %941 = vmatpush.msra.mxu0 0.0
  %942 = vmatpush.msra.mxu0 0.0
  %943 = vmatpush.msra.mxu0 0.0
  %944 = vmatpush.msra.mxu0 0.0
  %945 = vmatpush.msra.mxu0 0.0
  %946 = vmatpush.msra.mxu0 0.0
  %947 = vmatpush.msra.mxu0 0.0
  %948 = vmatpush.msra.mxu0 0.0
  %949 = vmatpush.msra.mxu0 0.0
  %950 = vmatpush.msra.mxu0 0.0
  %951 = vmatpush.msra.mxu0 0.0
  %952 = vmatpush.msra.mxu0 %v936
  %953 = vmatmul.f32.gmra.mxu0 %v494
  %v954 = vpop.f32.mrf.mxu0
  %v955 = vadd.f32 0.0, %v954
  %956 = vmatmul.f32.gmra.mxu0 %v497
  %v957 = vpop.f32.mrf.mxu0
  %v958 = vadd.f32 0.0, %v957
  %959 = vmatmul.f32.gmra.mxu0 %v500
  %v960 = vpop.f32.mrf.mxu0
  %v961 = vadd.f32 0.0, %v960
  %962 = vdwg.mxu0
  %v964 = vsel %vm287, %v955, 0
  %v967 = vsel %vm287, %v958, 0
  %969 = vmatpush.xpose.msra.mxu0 0.0
  %970 = vmatpush.xpose.msra.mxu0 0.0
  %971 = vmatpush.xpose.msra.mxu0 0.0
  %972 = vmatpush.xpose.msra.mxu0 0.0
  %973 = vmatpush.xpose.msra.mxu0 0.0
  %974 = vmatpush.xpose.msra.mxu0 0.0
  %975 = vmatpush.xpose.msra.mxu0 0.0
  %976 = vmatpush.xpose.msra.mxu0 0.0
  %977 = vmatpush.xpose.msra.mxu0 0.0
  %978 = vmatpush.xpose.msra.mxu0 0.0
  %979 = vmatpush.xpose.msra.mxu0 0.0
  %980 = vmatpush.xpose.msra.mxu0 0.0
  %981 = vmatpush.xpose.msra.mxu0 0.0
  %982 = vmatpush.xpose.msra.mxu0 0.0
  %983 = vmatpush.xpose.msra.mxu0 0.0
  %984 = vmatpush.xpose.msra.mxu0 %v967
  %985 = vmatmul.f32.gmra.mxu0 %v964
  %v986 = vpop.f32.mrf.mxu0
  %v987 = vadd.f32 0.0, %v986
  %988 = vdwg.mxu0
  %v989 = vmul.f32 %v987, 0.17677669
  %v990 = vsel %vm251, %v989, -inf
  %991 = vmax.xlane.f32.xlu0 %v990
  %v992 = vpop.xlane.xlu0 %991
  %v993 = vsub.f32 %v989, %v992
  %v994 = vmul.f32 %v993, 1.442695
  %v995 = vpow.pop %v994
  %v996 = vsel %vm251, %v995, 0.0
  %997 = vadd.xlane.f32.xlu0 %v996
  %v998 = vpop.xlane.xlu0 %997
  %v999 = vrcp.pop %v998
  %v1000 = vmul.f32 %v998, %v999
  %v1001 = vsub.f32 1.0, %v1000
  %v1002 = vmul.f32 %v999, %v1001
  %v1003 = vadd.f32 %v999, %v1002
  %vm1004 = vweird.f32 %v998
  %vm1005 = vweird.f32 %v999
  %vm1006 = vmor %vm1004, %vm1005
  %v1007 = vsel %vm1006, %v999, %v1003
  %v1008 = vand.u32 2147483647, %v998
  %vm1009 = vcmp.eq.f32.partialorder %v1008, 8.507059e+37
  %v1010 = vand.u32 %v998, 2147483648
  %v1011 = vor.u32 1.1754944e-38, %v1010
  %v1012 = vsel %vm1009, %v1011, %v1007
  %v1013 = vmul.f32 %v995, %v1012
  %v1015 = vsel %vm251, %v1013, 0
  %1017 = vmatpush.msra.mxu0 0.0
  %1018 = vmatpush.msra.mxu0 0.0
  %1019 = vmatpush.msra.mxu0 0.0
  %1020 = vmatpush.msra.mxu0 0.0
  %1021 = vmatpush.msra.mxu0 0.0
  %1022 = vmatpush.msra.mxu0 0.0
  %1023 = vmatpush.msra.mxu0 0.0
  %1024 = vmatpush.msra.mxu0 0.0
  %1025 = vmatpush.msra.mxu0 0.0
  %1026 = vmatpush.msra.mxu0 0.0
  %1027 = vmatpush.msra.mxu0 0.0
  %1028 = vmatpush.msra.mxu0 0.0
  %1029 = vmatpush.msra.mxu0 0.0
  %1030 = vmatpush.msra.mxu0 0.0
  %1031 = vmatpush.msra.mxu0 0.0
  %1032 = vmatpush.msra.mxu0 %v961
  %1033 = vmatmul.f32.gmra.mxu0 %v1015
  %v1034 = vpop.f32.mrf.mxu0
  %v1035 = vadd.f32 0.0, %v1034
  %1036 = vdwg.mxu0
  %v1037 = vsel %vm287, %v1035, 0.0
  %v1038 = vrot.slane %v1037, 4
  %v1039 = vadd.f32 %v1037, %v1038
  %v1040 = vrot.slane %v1039, 2
  %v1041 = vadd.f32 %v1039, %v1040
  %v1042 = vrot.slane %v1041, 1
  %v1043 = vadd.f32 %v1041, %v1042
  %v1044 = vmul.f32 %v1043, %v375
  %v1045 = vsub.f32 %v1035, %v1044
  %v1046 = vmul.f32 %v1045, %v1045
  %v1047 = vsel %vm287, %v1046, 0.0
  %v1048 = vrot.slane %v1047, 4
  %v1049 = vadd.f32 %v1047, %v1048
  %v1050 = vrot.slane %v1049, 2
  %v1051 = vadd.f32 %v1049, %v1050
  %v1052 = vrot.slane %v1051, 1
  %v1053 = vadd.f32 %v1051, %v1052
  %v1054 = vmul.f32 %v1053, %v375
  %v1055 = vadd.f32 %v1054, 1e-05
  %v1056 = vrsqrt.pop %v1055
  %v1057 = vmul.f32 %v1056, %v1055
  %v1058 = vmul.f32 %v1057, %v1056
  %v1059 = vmul.f32 0.5, %v1058
  %v1060 = vsub.f32 1.5, %v1059
  %v1061 = vmul.f32 %v1056, %v1060
  %vm1062 = vweird.f32 %v1055
  %vm1063 = vweird.f32 %v1056
  %vm1064 = vmor %vm1062, %vm1063
  %v1065 = vsel %vm1064, %v1056, %v1061
  %v1066 = vmul.f32 %v1045, %v1065
  %v1067 = vmul.f32 %v1066, %v635
  %v1068 = vadd.f32 %v1067, %v641
  %1069 = vmatpush.msra.mxu0 0.0
  %1070 = vmatpush.msra.mxu0 0.0
  %1071 = vmatpush.msra.mxu0 0.0
  %1072 = vmatpush.msra.mxu0 0.0
  %1073 = vmatpush.msra.mxu0 0.0
  %1074 = vmatpush.msra.mxu0 0.0
  %1075 = vmatpush.msra.mxu0 0.0
  %1076 = vmatpush.msra.mxu0 0.0
  %1077 = vmatpush.msra.mxu0 0.0
  %1078 = vmatpush.msra.mxu0 0.0
  %1079 = vmatpush.msra.mxu0 0.0
  %1080 = vmatpush.msra.mxu0 0.0
  %1081 = vmatpush.msra.mxu0 0.0
  %1082 = vmatpush.msra.mxu0 0.0
  %1083 = vmatpush.msra.mxu0 0.0
  %1084 = vmatpush.msra.mxu0 %v1068
  %1085 = vmatmul.f32.gmra.mxu0 %v645
  %v1086 = vpop.f32.mrf.mxu0
  %v1087 = vadd.f32 0.0, %v1086
  %1088 = vdwg.mxu0
  %v1089 = vmul.f32 %v1087, 0.5
  %v1090 = vmul.f32 %v1087, 0.70710677
  %v1091 = vmul.f32 %v1090, %v1090
  %v1092 = vmin.f32 16.0, %v1091
  %v1093 = vmul.f32 %v1092, 2.1237322e-06
  %v1094 = vadd.f32 %v1093, 0.00028619796
  %v1095 = vmul.f32 %v1092, %v1094
  %v1096 = vadd.f32 %v1095, 0.0036580483
  %v1097 = vmul.f32 %v1092, %v1096
  %v1098 = vadd.f32 %v1097, 0.05243302
  %v1099 = vmul.f32 %v1092, %v1098
  %v1100 = vadd.f32 %v1099, 0.18741608
  %v1101 = vmul.f32 %v1092, %v1100
  %v1102 = vadd.f32 %v1101, 1.1283791
  %v1103 = vmul.f32 %v1090, %v1102
  %v1104 = vmul.f32 %v1092, 3.8918573e-05
  %v1105 = vadd.f32 %v1104, 0.001143296
  %v1106 = vmul.f32 %v1092, %v1105
  %v1107 = vadd.f32 %v1106, 0.014752088
  %v1108 = vmul.f32 %v1092, %v1107
  %v1109 = vadd.f32 %v1108, 0.112945676
  %v1110 = vmul.f32 %v1092, %v1109
  %v1111 = vadd.f32 %v1110, 0.4994258
  %v1112 = vmul.f32 %v1092, %v1111
  %v1113 = vadd.f32 %v1112, 1.0
  %v1114 = vrcp.pop %v1113
  %v1115 = vmul.f32 %v1113, %v1114
  %v1116 = vsub.f32 1.0, %v1115
  %v1117 = vmul.f32 %v1114, %v1116
  %v1118 = vadd.f32 %v1114, %v1117
  %vm1119 = vweird.f32 %v1113
  %vm1120 = vweird.f32 %v1114
  %vm1121 = vmor %vm1119, %vm1120
  %v1122 = vsel %vm1121, %v1114, %v1118
  %v1123 = vand.u32 2147483647, %v1113
  %vm1124 = vcmp.eq.f32.partialorder %v1123, 8.507059e+37
  %v1125 = vand.u32 %v1113, 2147483648
  %v1126 = vor.u32 1.1754944e-38, %v1125
  %v1127 = vsel %vm1124, %v1126, %v1122
  %v1128 = vmul.f32 %v1103, %v1127
  %v1129 = vmin.f32 %v1128, 1.0
  %v1130 = vmax.f32 %v1129, -1.0
  %v1131 = vadd.f32 %v1130, 1.0
  %v1132 = vmul.f32 %v1089, %v1131
  %v1133 = vperm.slane %v1132, 0
  %v1134 = vmul.f32 %v1133, %v715
  %v1135 = vperm.slane %v1132, 1
  %v1136 = vmul.f32 %v1135, %v721
  %v1137 = vadd.f32 %v1134, %v1136
  %v1138 = vadd.f32 %v1035, %v1137
  %v1139 = vsel %vm287, %v1138, 0.0
  %v1140 = vrot.slane %v1139, 4
  %v1141 = vadd.f32 %v1139, %v1140
  %v1142 = vrot.slane %v1141, 2
  %v1143 = vadd.f32 %v1141, %v1142
  %v1144 = vrot.slane %v1143, 1
  %v1145 = vadd.f32 %v1143, %v1144
  %v1146 = vmul.f32 %v1145, %v375
  %1147 = vst.msk [vmem:[#allocation3 + $0x1] sm:$0x1] %vm175, %v1146
  %v1148 = vld [vmem:[#allocation3] sm:$0x3]
  %v1149 = vld [vmem:[%s9] sm:$0x1]
  %v1150 = vld [vmem:[%s10] sm:$0x1]
  %vm1151 = vcmask 254976
  %v1152 = vsel %vm1151, %v1148, 0.0
  %1153 = vadd.xlane.f32.xlu0 %v1152
  %v1154 = vpop.xlane.xlu0 %1153
  %v1155 = vrcp.pop 32.0
  %v1156 = vmul.f32 32.0, %v1155
  %v1157 = vsub.f32 1.0, %v1156
  %v1158 = vmul.f32 %v1155, %v1157
  %v1159 = vadd.f32 %v1155, %v1158
  %vm1160 = vweird.f32 %v1155
  %v1161 = vsel %vm1160, %v1155, %v1159
  %v1162 = vmul.f32 %v1154, %v1161
  %v1163 = vsub.f32 %v1148, %v1162
  %v1164 = vmul.f32 %v1163, %v1163
  %v1165 = vsel %vm1151, %v1164, 0.0
  %1166 = vadd.xlane.f32.xlu0 %v1165
  %v1167 = vpop.xlane.xlu0 %1166
  %v1168 = vmul.f32 %v1167, %v1161
  %v1169 = vadd.f32 %v1168, 1e-05
  %v1170 = vrsqrt.pop %v1169
  %v1171 = vmul.f32 %v1170, %v1169
  %v1172 = vmul.f32 %v1171, %v1170
  %v1173 = vmul.f32 0.5, %v1172
  %v1174 = vsub.f32 1.5, %v1173
  %v1175 = vmul.f32 %v1170, %v1174
  %vm1176 = vweird.f32 %v1169
  %vm1177 = vweird.f32 %v1170
  %vm1178 = vmor %vm1176, %vm1177
  %v1179 = vsel %vm1178, %v1170, %v1175
  %v1180 = vmul.f32 %v1163, %v1179
  %v1182 = vperm.slane %v1149, 0
  %v1184 = vmul.f32 %v1180, %v1182
  %v1186 = vperm.slane %v1150, 0
  %v1188 = vadd.f32 %v1184, %v1186
  %v1189 = vld [vmem:[%s11] sm:$0xff]
  %v1190 = vld [vmem:[%s11 + $0x8] sm:$0xff]
  %v1191 = vld [vmem:[%s11 + $0x10] sm:$0xff]
  %v1192 = vld [vmem:[%s11 + $0x18] sm:$0xff]
  %v1194 = vsel %vm287, %v1188, 0
  %1196 = vmatpush.msra.mxu0 0.0
  %1197 = vmatpush.msra.mxu0 0.0
  %1198 = vmatpush.msra.mxu0 0.0
  %1199 = vmatpush.msra.mxu0 0.0
  %1200 = vmatpush.msra.mxu0 0.0
  %1201 = vmatpush.msra.mxu0 0.0
  %1202 = vmatpush.msra.mxu0 0.0
  %1203 = vmatpush.msra.mxu0 0.0
  %1204 = vmatpush.msra.mxu0 0.0
  %1205 = vmatpush.msra.mxu0 0.0
  %1206 = vmatpush.msra.mxu0 0.0
  %1207 = vmatpush.msra.mxu0 0.0
  %1208 = vmatpush.msra.mxu0 %v1192
  %1209 = vmatpush.msra.mxu0 %v1191
  %1210 = vmatpush.msra.mxu0 %v1190
  %1211 = vmatpush.msra.mxu0 %v1189
  %1212 = vmatmul.f32.gmra.mxu0 %v1194
  %v1213 = vpop.f32.mrf.mxu0
  %v1214 = vadd.f32 0.0, %v1213
  %1215 = vdwg.mxu0
  %v1216 = vmul.f32 %v1214, 0.5
  %v1217 = vmul.f32 %v1214, 0.70710677
  %v1218 = vmul.f32 %v1217, %v1217
  %v1219 = vmin.f32 16.0, %v1218
  %v1220 = vmul.f32 %v1219, 2.1237322e-06
  %v1221 = vadd.f32 %v1220, 0.00028619796
  %v1222 = vmul.f32 %v1219, %v1221
  %v1223 = vadd.f32 %v1222, 0.0036580483
  %v1224 = vmul.f32 %v1219, %v1223
  %v1225 = vadd.f32 %v1224, 0.05243302
  %v1226 = vmul.f32 %v1219, %v1225
  %v1227 = vadd.f32 %v1226, 0.18741608
  %v1228 = vmul.f32 %v1219, %v1227
  %v1229 = vadd.f32 %v1228, 1.1283791
  %v1230 = vmul.f32 %v1217, %v1229
  %v1231 = vmul.f32 %v1219, 3.8918573e-05
  %v1232 = vadd.f32 %v1231, 0.001143296
  %v1233 = vmul.f32 %v1219, %v1232
  %v1234 = vadd.f32 %v1233, 0.014752088
  %v1235 = vmul.f32 %v1219, %v1234
  %v1236 = vadd.f32 %v1235, 0.112945676
  %v1237 = vmul.f32 %v1219, %v1236
  %v1238 = vadd.f32 %v1237, 0.4994258
  %v1239 = vmul.f32 %v1219, %v1238
  %v1240 = vadd.f32 %v1239, 1.0
  %v1241 = vrcp.pop %v1240
  %v1242 = vmul.f32 %v1240, %v1241
  %v1243 = vsub.f32 1.0, %v1242
  %v1244 = vmul.f32 %v1241, %v1243
  %v1245 = vadd.f32 %v1241, %v1244
  %vm1246 = vweird.f32 %v1240
  %vm1247 = vweird.f32 %v1241
  %vm1248 = vmor %vm1246, %vm1247
  %v1249 = vsel %vm1248, %v1241, %v1245
  %v1250 = vand.u32 2147483647, %v1240
  %vm1251 = vcmp.eq.f32.partialorder %v1250, 8.507059e+37
  %v1252 = vand.u32 %v1240, 2147483648
  %v1253 = vor.u32 1.1754944e-38, %v1252
  %v1254 = vsel %vm1251, %v1253, %v1249
  %v1255 = vmul.f32 %v1230, %v1254
  %v1256 = vmin.f32 %v1255, 1.0
  %v1257 = vmax.f32 %v1256, -1.0
  %v1258 = vadd.f32 %v1257, 1.0
  %v1259 = vmul.f32 %v1216, %v1258
  %v1260 = vld [vmem:[%s12] sm:$0xff]
  %v1262 = vsel %vm251, %v1259, 0
  %1264 = vmatpush.msra.mxu0 0.0
  %1265 = vmatpush.msra.mxu0 0.0
  %1266 = vmatpush.msra.mxu0 0.0
  %1267 = vmatpush.msra.mxu0 0.0
  %1268 = vmatpush.msra.mxu0 0.0
  %1269 = vmatpush.msra.mxu0 0.0
  %1270 = vmatpush.msra.mxu0 0.0
  %1271 = vmatpush.msra.mxu0 0.0
  %1272 = vmatpush.msra.mxu0 0.0
  %1273 = vmatpush.msra.mxu0 0.0
  %1274 = vmatpush.msra.mxu0 0.0
  %1275 = vmatpush.msra.mxu0 0.0
  %1276 = vmatpush.msra.mxu0 0.0
  %1277 = vmatpush.msra.mxu0 0.0
  %1278 = vmatpush.msra.mxu0 0.0
  %1279 = vmatpush.msra.mxu0 %v1260
  %1280 = vmatmul.f32.gmra.mxu0 %v1262
  %v1281 = vpop.f32.mrf.mxu0
  %v1282 = vadd.f32 0.0, %v1281
  %1283 = vdwg.mxu0
  %v1284 = vld [vmem:[%s13] sm:$0x1]
  %v1285 = vld [vmem:[%s14] sm:$0x1]
  %v1286 = vsel %vm1151, %v1282, 0.0
  %1287 = vadd.xlane.f32.xlu0 %v1286
  %v1288 = vpop.xlane.xlu0 %1287
  %v1289 = vmul.f32 %v1288, %v1161
  %v1290 = vsub.f32 %v1282, %v1289
  %v1291 = vmul.f32 %v1290, %v1290
  %v1292 = vsel %vm1151, %v1291, 0.0
  %1293 = vadd.xlane.f32.xlu0 %v1292
  %v1294 = vpop.xlane.xlu0 %1293
  %v1295 = vmul.f32 %v1294, %v1161
  %v1296 = vadd.f32 %v1295, 1e-05
  %v1297 = vrsqrt.pop %v1296
  %v1298 = vmul.f32 %v1297, %v1296
  %v1299 = vmul.f32 %v1298, %v1297
  %v1300 = vmul.f32 0.5, %v1299
  %v1301 = vsub.f32 1.5, %v1300
  %v1302 = vmul.f32 %v1297, %v1301
  %vm1303 = vweird.f32 %v1296
  %vm1304 = vweird.f32 %v1297
  %vm1305 = vmor %vm1303, %vm1304
  %v1306 = vsel %vm1305, %v1297, %v1302
  %v1307 = vmul.f32 %v1290, %v1306
  %v1309 = vperm.slane %v1284, 0
  %v1311 = vmul.f32 %v1307, %v1309
  %v1313 = vperm.slane %v1285, 0
  %v1315 = vadd.f32 %v1311, %v1313
  %v1316 = vld [vmem:[%s15] sm:$0xff]
  %v1317 = vld [vmem:[%s15 + $0x8] sm:$0xff]
  %v1318 = vld [vmem:[%s15 + $0x10] sm:$0xff]
  %v1319 = vld [vmem:[%s15 + $0x18] sm:$0xff]
  %v1320 = vld [vmem:[#allocation4] sm:$0x1]
  %v1322 = vperm.slane %v1320, 0
  %v1325 = vsel %vm287, %v1315, 0
  %1327 = vmatpush.msra.mxu0 0.0
  %1328 = vmatpush.msra.mxu0 0.0
  %1329 = vmatpush.msra.mxu0 0.0
  %1330 = vmatpush.msra.mxu0 0.0
  %1331 = vmatpush.msra.mxu0 0.0
  %1332 = vmatpush.msra.mxu0 0.0
  %1333 = vmatpush.msra.mxu0 0.0
  %1334 = vmatpush.msra.mxu0 0.0
  %1335 = vmatpush.msra.mxu0 0.0
  %1336 = vmatpush.msra.mxu0 0.0
  %1337 = vmatpush.msra.mxu0 0.0
  %1338 = vmatpush.msra.mxu0 0.0
  %1339 = vmatpush.msra.mxu0 %v1319
  %1340 = vmatpush.msra.mxu0 %v1318
  %1341 = vmatpush.msra.mxu0 %v1317
  %1342 = vmatpush.msra.mxu0 %v1316
  %1343 = vmatmul.f32.gmra.mxu0 %v1325
  %v1344 = vpop.f32.mrf.mxu0
  %v1345 = vadd.f32 %v1322, %v1344
  %1346 = vdwg.mxu0
  %vm1347 = vcmask 1024
  %1348 = vst.msk [vmem:[%s17] sm:$0x3] %vm1347, %v1345
  // Predicated region
  $region70: #{transformer_forward.1} parent=0 // pred_check
    _
  $region71: #{transformer_forward.1} parent=0 // pred_check_branch
    %1350 = sbr.rel (0) target = $region73
  $region72: #{transformer_forward.1} parent=0 // pred_region
    _
  $region73: #{transformer_forward.1} parent=0 // pred_fallthru
    _
  // Predicated region
  $region74: #{transformer_forward.1} parent=0 // pred_check
    _
  $region75: #{transformer_forward.1} parent=0 // pred_check_branch
    %1352 = sbr.rel (0) target = $region77
  $region76: #{transformer_forward.1} parent=0 // pred_region
    _
  $region77: #{transformer_forward.1} parent=0 // pred_fallthru
    _

</llo_original>
